<compile_context>
chip_gen: v5e
topology: v5e:2x2
jax: 0.10.0
libtpu: 0.0.40
codegen_flags: <defaults>
</compile_context>

<pallas_src>
import jax
import jax.numpy as jnp
from jax.experimental import pallas as pl
from jax.experimental.pallas import tpu as pltpu


def _round_up(a, m):
    return (a + m - 1) // m * m


def _cdiv(a, b):
    return (a + b - 1) // b


def dqn_forward(x, raw, max_batch_tile=256):
    """x: (B, L, 3) float32; raw: PyTorch-layout parameters (see __main__)."""
    B, L, Ci = x.shape
    assert L % 4 == 0, "input_samples must be divisible by 4"
    C1 = raw["conv1_w"].shape[0]          # 16
    C2 = raw["conv2_w"].shape[0]          # 32
    H = raw["fc1_w"].shape[0]             # 128
    O = raw["fc2_w"].shape[0]
    L2, L4 = L // 2, L // 4

    f32 = jnp.float32
    x = x.astype(f32)

    # ----- batch tiling: rows multiple of 8; >=2 grid steps when B allows (v7x) -----
    BT = max(8, min(max_batch_tile, _round_up(_cdiv(B, 2), 8)))
    Bp = _round_up(B, BT)
    G = Bp // BT
    R = BT * L              # conv1 rows per tile
    R2 = BT * L2            # conv2 rows per tile
    Op = _round_up(O, 128)  # lane-dense (padded) output width

    # ----- host side: only batch zero-pad + a free flatten (NO im2col) -----
    xflat = jnp.pad(x, ((0, Bp - B), (0, 0), (0, 0))).reshape(Bp * L, Ci)

    # ----- parameter permutations so the kernel only does plain matmuls -----
    # conv taps are lane-concatenated [prev | cent | next] -> weight rows are (k, cin).
    w1cat = jnp.transpose(raw["conv1_w"].astype(f32), (2, 1, 0)).reshape(3 * Ci, C1)
    b1 = raw["conv1_b"].astype(f32).reshape(1, C1)
    w2cat = jnp.transpose(raw["conv2_w"].astype(f32), (2, 1, 0)).reshape(3 * C1, C2)
    b2 = raw["conv2_b"].astype(f32).reshape(1, C2)
    # PyTorch flattens (C2, L4) channel-major; the kernel flattens (L4, C2).
    fw1 = (raw["fc1_w"].astype(f32).reshape(H, C2, L4)
           .transpose(0, 2, 1).reshape(H, L4 * C2).T)                # (L4*C2, H)
    fb1 = raw["fc1_b"].astype(f32).reshape(1, H)
    fw2p = jnp.zeros((H, Op), f32).at[:, :O].set(raw["fc2_w"].astype(f32).T)
    fb2p = jnp.zeros((1, Op), f32).at[:, :O].set(raw["fc2_b"].astype(f32).reshape(1, O))

    def kernel(x_ref, w1_ref, b1_ref, w2_ref, b2_ref,
               fw1_ref, fb1_ref, fw2_ref, fb2_ref,
               o_ref,
               xs_ref, y1_ref, p1s_ref, y2_ref):
        # ---- in-kernel per-sample boundary masks (no HBM mask inputs) ----
        pos1 = jax.lax.broadcasted_iota(jnp.int32, (R, 1), 0) % L
        first1 = pos1 == 0
        last1 = pos1 == (L - 1)
        pos2 = jax.lax.broadcasted_iota(jnp.int32, (R2, 1), 0) % L2
        first2 = pos2 == 0
        last2 = pos2 == (L2 - 1)

        # -------- conv1: shifted-sublane taps, one fused (R, 9) @ (9, 16) dot -------
        xv = x_ref[...]                                   # (R, Ci)
        xs_ref[8:8 + R, :] = xv                           # aligned stage; guard rows
        prev1 = xs_ref[7:7 + R, :]                        #   only feed masked rows
        nxt1 = xs_ref[9:9 + R, :]
        taps1 = jnp.concatenate(
            [jnp.where(first1, 0.0, prev1), xv, jnp.where(last1, 0.0, nxt1)],
            axis=-1)                                      # (R, 3*Ci), (k, ci) lanes
        y1 = jnp.dot(taps1, w1_ref[...], preferred_element_type=jnp.float32)
        y1_ref[...] = jnp.maximum(y1 + b1_ref[...], 0.0)  # (R, C1)

        # ---------------- maxpool1 (k=2, stride=2 along L) ----------------
        p1 = jnp.maximum(y1_ref[pl.ds(0, R2, stride=2), :],
                         y1_ref[pl.ds(1, R2, stride=2), :])           # (R2, C1)

        # -------- conv2: same trick, one fused (R2, 48) @ (48, 32) dot -------
        p1s_ref[8:8 + R2, :] = p1
        prev2 = p1s_ref[7:7 + R2, :]
        nxt2 = p1s_ref[9:9 + R2, :]
        taps2 = jnp.concatenate(
            [jnp.where(first2, 0.0, prev2), p1, jnp.where(last2, 0.0, nxt2)],
            axis=-1)                                      # (R2, 3*C1), (k, c1) lanes
        y2 = jnp.dot(taps2, w2_ref[...], preferred_element_type=jnp.float32)
        y2_ref[...] = jnp.maximum(y2 + b2_ref[...], 0.0)  # (R2, C2)

        # ------ maxpool2 + flatten fused into a single K = L4*C2 matmul ------
        hin = jnp.concatenate(
            [jnp.maximum(y2_ref[pl.ds(2 * l4, BT, stride=L2), :],
                         y2_ref[pl.ds(2 * l4 + 1, BT, stride=L2), :])
             for l4 in range(L4)], axis=-1)               # (BT, L4*C2), (l4, c2) lanes
        h = jnp.dot(hin, fw1_ref[...], preferred_element_type=jnp.float32)
        h = jnp.maximum(h + fb1_ref[...], 0.0)            # (BT, H)

        # ---------------- fc2 (lane-dense, padded to Op lanes) ----------------
        o_ref[...] = (jnp.dot(h, fw2_ref[...], preferred_element_type=jnp.float32)
                      + fb2_ref[...])

    grid_spec = pltpu.PrefetchScalarGridSpec(
        num_scalar_prefetch=0,
        grid=(G,),
        in_specs=[
            pl.BlockSpec((R, Ci), lambda b: (b, 0)),          # raw input rows
            pl.BlockSpec((3 * Ci, C1), lambda b: (0, 0)),     # conv1 weight (k,ci)->c1
            pl.BlockSpec((1, C1), lambda b: (0, 0)),          # conv1 bias
            pl.BlockSpec((3 * C1, C2), lambda b: (0, 0)),     # conv2 weight (k,c1)->c2
            pl.BlockSpec((1, C2), lambda b: (0, 0)),          # conv2 bias
            pl.BlockSpec((L4 * C2, H), lambda b: (0, 0)),     # fc1 weight (l4,c2)->h
            pl.BlockSpec((1, H), lambda b: (0, 0)),           # fc1 bias
            pl.BlockSpec((H, Op), lambda b: (0, 0)),          # fc2 weight (padded)
            pl.BlockSpec((1, Op), lambda b: (0, 0)),          # fc2 bias (padded)
        ],
        out_specs=pl.BlockSpec((BT, Op), lambda b: (b, 0)),
        scratch_shapes=[
            pltpu.VMEM((R + 16, Ci), jnp.float32),    # conv1 tap staging (+guards)
            pltpu.VMEM((R, C1), jnp.float32),         # conv1 output (pool1 reads)
            pltpu.VMEM((R2 + 16, C1), jnp.float32),   # pool1 staging (+guards)
            pltpu.VMEM((R2, C2), jnp.float32),        # conv2 output (pool2 reads)
        ],
    )

    n_params = (w1cat.size + b1.size + w2cat.size + b2.size
                + fw1.size + fb1.size + fw2p.size + fb2p.size)
    cost = pl.CostEstimate(
        flops=2 * Bp * (L * 3 * Ci * C1 + L2 * 3 * C1 * C2 + L4 * C2 * H + H * Op),
        transcendentals=0,
        bytes_accessed=4 * (Bp * L * Ci + Bp * Op + G * int(n_params)),
    )

    out = pl.pallas_call(
        kernel,
        out_shape=jax.ShapeDtypeStruct((Bp, Op), jnp.float32),
        grid_spec=grid_spec,
        compiler_params=pltpu.CompilerParams(
            dimension_semantics=("parallel",),
            vmem_limit_bytes=32 * 1024 * 1024),
        cost_estimate=cost,
    )(xflat, w1cat, b1, w2cat, b2, fw1, fb1, fw2p, fb2p)

    return out[:B, :O]


def ref_forward(x, raw):
    """Pure-JAX reference matching the PyTorch forward exactly (NCW conv)."""
    xt = jnp.transpose(x, (0, 2, 1))                        # (B, 3, L)
    y = jax.lax.conv_general_dilated(
        xt, raw["conv1_w"], window_strides=(1,), padding=[(1, 1)],
        dimension_numbers=("NCH", "OIH", "NCH"))
    y = jax.nn.relu(y + raw["conv1_b"][None, :, None])
    B, C, L = y.shape
    y = jnp.max(y.reshape(B, C, L // 2, 2), axis=-1)        # maxpool1
    y = jax.lax.conv_general_dilated(
        y, raw["conv2_w"], window_strides=(1,), padding=[(1, 1)],
        dimension_numbers=("NCH", "OIH", "NCH"))
    y = jax.nn.relu(y + raw["conv2_b"][None, :, None])
    B, C, L = y.shape
    y = jnp.max(y.reshape(B, C, L // 2, 2), axis=-1)        # maxpool2
    flat = y.reshape(B, -1)                                 # channel-major flatten
    h = jax.nn.relu(flat @ raw["fc1_w"].T + raw["fc1_b"])
    return h @ raw["fc2_w"].T + raw["fc2_b"]


if __name__ == "__main__":
    B = 2                # batch
    L = 16               # input_samples (must be divisible by 4)
    O = 4                # output_features
    L4 = L // 4

    key = jax.random.PRNGKey(0)
    ks = jax.random.split(key, 9)
    raw = {
        "conv1_w": 0.1 * jax.random.normal(ks[0], (16, 3, 3), jnp.float32),
        "conv1_b": 0.1 * jax.random.normal(ks[1], (16,), jnp.float32),
        "conv2_w": 0.1 * jax.random.normal(ks[2], (32, 16, 3), jnp.float32),
        "conv2_b": 0.1 * jax.random.normal(ks[3], (32,), jnp.float32),
        "fc1_w": 0.1 * jax.random.normal(ks[4], (128, 32 * L4), jnp.float32),
        "fc1_b": 0.1 * jax.random.normal(ks[5], (128,), jnp.float32),
        "fc2_w": 0.1 * jax.random.normal(ks[6], (O, 128), jnp.float32),
        "fc2_b": 0.1 * jax.random.normal(ks[7], (O,), jnp.float32),
    }
    x = jax.random.normal(ks[8], (B, L, 3), jnp.float32)

    out = jax.block_until_ready(dqn_forward(x, raw))
    ref = jax.block_until_ready(ref_forward(x, raw))

    assert out.shape == (B, O), out.shape
    if not bool(jnp.allclose(out, ref, atol=1e-4, rtol=1e-4)):
        raise AssertionError(
            f"mismatch: max abs err = {float(jnp.max(jnp.abs(out - ref)))}")
    print("KERNEL_OK")
</pallas_src>

<mosaic_0001>
module attributes {stable_mosaic.version = 11 : i64} {
  func.func @kernel(%arg0: i32, %arg1: memref<128x3xf32, #tpu.memory_space<vmem>>, %arg2: memref<9x16xf32, #tpu.memory_space<vmem>>, %arg3: memref<1x16xf32, #tpu.memory_space<vmem>>, %arg4: memref<48x32xf32, #tpu.memory_space<vmem>>, %arg5: memref<1x32xf32, #tpu.memory_space<vmem>>, %arg6: memref<128x128xf32, #tpu.memory_space<vmem>>, %arg7: memref<1x128xf32, #tpu.memory_space<vmem>>, %arg8: memref<128x128xf32, #tpu.memory_space<vmem>>, %arg9: memref<1x128xf32, #tpu.memory_space<vmem>>, %arg10: memref<8x128xf32, #tpu.memory_space<vmem>>, %arg11: memref<144x3xf32, #tpu.memory_space<vmem>>, %arg12: memref<128x16xf32, #tpu.memory_space<vmem>>, %arg13: memref<80x16xf32, #tpu.memory_space<vmem>>, %arg14: memref<64x32xf32, #tpu.memory_space<vmem>>) attributes {dimension_semantics = [#tpu.dimension_semantics<parallel>], iteration_bounds = array<i64: 1>, scalar_prefetch = 0 : i64, scratch_operands = 4 : i64, tpu.core_type = #tpu.core_type<tc>, window_params = [{transform_indices = @transform_0, window_bounds = array<i64: 128, 3>}, {pipeline_mode = #tpu.pipeline_mode<synchronous>, transform_indices = @transform_1, window_bounds = array<i64: 9, 16>}, {pipeline_mode = #tpu.pipeline_mode<synchronous>, transform_indices = @transform_2, window_bounds = array<i64: 1, 16>}, {pipeline_mode = #tpu.pipeline_mode<synchronous>, transform_indices = @transform_3, window_bounds = array<i64: 48, 32>}, {pipeline_mode = #tpu.pipeline_mode<synchronous>, transform_indices = @transform_4, window_bounds = array<i64: 1, 32>}, {pipeline_mode = #tpu.pipeline_mode<synchronous>, transform_indices = @transform_5, window_bounds = array<i64: 128, 128>}, {pipeline_mode = #tpu.pipeline_mode<synchronous>, transform_indices = @transform_6, window_bounds = array<i64: 1, 128>}, {pipeline_mode = #tpu.pipeline_mode<synchronous>, transform_indices = @transform_7, window_bounds = array<i64: 128, 128>}, {pipeline_mode = #tpu.pipeline_mode<synchronous>, transform_indices = @transform_8, window_bounds = array<i64: 1, 128>}, {transform_indices = @transform_9, window_bounds = array<i64: 8, 128>}]} {
    %0 = tpu.iota {dimensions = array<i32: 0>} : vector<128x1xi32>
    %c16_i32 = arith.constant 16 : i32
    %c0_i32 = arith.constant 0 : i32
    %1 = arith.cmpi eq, %c16_i32, %c0_i32 : i32
    %c1_i32 = arith.constant 1 : i32
    %2 = arith.select %1, %c1_i32, %c16_i32 : i32
    %3 = vector.broadcast %2 : i32 to vector<128x1xi32>
    %4 = arith.remsi %0, %3 : vector<128x1xi32>
    %c0_i32_0 = arith.constant 0 : i32
    %5 = vector.broadcast %c0_i32_0 : i32 to vector<128x1xi32>
    %6 = arith.cmpi ne, %4, %5 : vector<128x1xi32>
    %c0_i32_1 = arith.constant 0 : i32
    %7 = vector.broadcast %c0_i32_1 : i32 to vector<128x1xi32>
    %8 = arith.cmpi slt, %4, %7 : vector<128x1xi32>
    %c0_i32_2 = arith.constant 0 : i32
    %9 = arith.cmpi slt, %2, %c0_i32_2 : i32
    %10 = vector.broadcast %9 : i1 to vector<128x1xi1>
    %11 = vector.broadcast %10 : vector<128x1xi1> to vector<128x1xi1>
    %12 = arith.xori %8, %11 : vector<128x1xi1>
    %13 = arith.andi %12, %6 : vector<128x1xi1>
    %14 = vector.broadcast %2 : i32 to vector<128x1xi32>
    %15 = arith.addi %4, %14 : vector<128x1xi32>
    %16 = arith.select %13, %15, %4 : vector<128x1xi1>, vector<128x1xi32>
    %c0_i32_3 = arith.constant 0 : i32
    %17 = vector.broadcast %c0_i32_3 : i32 to vector<128x1xi32>
    %18 = arith.cmpi eq, %16, %17 : vector<128x1xi32>
    %c15_i32 = arith.constant 15 : i32
    %19 = vector.broadcast %c15_i32 : i32 to vector<128x1xi32>
    %20 = arith.cmpi eq, %16, %19 : vector<128x1xi32>
    %21 = tpu.iota {dimensions = array<i32: 0>} : vector<64x1xi32>
    %c8_i32 = arith.constant 8 : i32
    %c0_i32_4 = arith.constant 0 : i32
    %22 = arith.cmpi eq, %c8_i32, %c0_i32_4 : i32
    %c1_i32_5 = arith.constant 1 : i32
    %23 = arith.select %22, %c1_i32_5, %c8_i32 : i32
    %24 = vector.broadcast %23 : i32 to vector<64x1xi32>
    %25 = arith.remsi %21, %24 : vector<64x1xi32>
    %c0_i32_6 = arith.constant 0 : i32
    %26 = vector.broadcast %c0_i32_6 : i32 to vector<64x1xi32>
    %27 = arith.cmpi ne, %25, %26 : vector<64x1xi32>
    %c0_i32_7 = arith.constant 0 : i32
    %28 = vector.broadcast %c0_i32_7 : i32 to vector<64x1xi32>
    %29 = arith.cmpi slt, %25, %28 : vector<64x1xi32>
    %c0_i32_8 = arith.constant 0 : i32
    %30 = arith.cmpi slt, %23, %c0_i32_8 : i32
    %31 = vector.broadcast %30 : i1 to vector<64x1xi1>
    %32 = vector.broadcast %31 : vector<64x1xi1> to vector<64x1xi1>
    %33 = arith.xori %29, %32 : vector<64x1xi1>
    %34 = arith.andi %33, %27 : vector<64x1xi1>
    %35 = vector.broadcast %23 : i32 to vector<64x1xi32>
    %36 = arith.addi %25, %35 : vector<64x1xi32>
    %37 = arith.select %34, %36, %25 : vector<64x1xi1>, vector<64x1xi32>
    %c0_i32_9 = arith.constant 0 : i32
    %38 = vector.broadcast %c0_i32_9 : i32 to vector<64x1xi32>
    %39 = arith.cmpi eq, %37, %38 : vector<64x1xi32>
    %c7_i32 = arith.constant 7 : i32
    %40 = vector.broadcast %c7_i32 : i32 to vector<64x1xi32>
    %41 = arith.cmpi eq, %37, %40 : vector<64x1xi32>
    %c0 = arith.constant 0 : index
    %c0_10 = arith.constant 0 : index
    %42 = vector.load %arg1[%c0, %c0_10] : memref<128x3xf32, #tpu.memory_space<vmem>>, vector<128x3xf32>
    %c8 = arith.constant 8 : index
    %c0_11 = arith.constant 0 : index
    %43 = vector.load %arg11[%c8, %c0_11] : memref<144x3xf32, #tpu.memory_space<vmem>>, vector<128x3xf32>
    tpu.vector_store %arg11[%c8, %c0_11], %42 {strides = array<i32>} : memref<144x3xf32, #tpu.memory_space<vmem>>, vector<128x3xf32>,
    %c7 = arith.constant 7 : index
    %c0_12 = arith.constant 0 : index
    %44 = vector.load %arg11[%c7, %c0_12] : memref<144x3xf32, #tpu.memory_space<vmem>>, vector<128x3xf32>
    %c9 = arith.constant 9 : index
    %c0_13 = arith.constant 0 : index
    %45 = vector.load %arg11[%c9, %c0_13] : memref<144x3xf32, #tpu.memory_space<vmem>>, vector<128x3xf32>
    %cst = arith.constant 0.000000e+00 : f32
    %46 = vector.shape_cast %18 : vector<128x1xi1> to vector<128x1xi1>
    %47 = vector.broadcast %46 : vector<128x1xi1> to vector<128x3xi1>
    %48 = vector.broadcast %cst : f32 to vector<128x3xf32>
    %49 = arith.select %47, %48, %44 : vector<128x3xi1>, vector<128x3xf32>
    %cst_14 = arith.constant 0.000000e+00 : f32
    %50 = vector.shape_cast %20 : vector<128x1xi1> to vector<128x1xi1>
    %51 = vector.broadcast %50 : vector<128x1xi1> to vector<128x3xi1>
    %52 = vector.broadcast %cst_14 : f32 to vector<128x3xf32>
    %53 = arith.select %51, %52, %45 : vector<128x3xi1>, vector<128x3xf32>
    %54 = tpu.concatenate %49, %42, %53 in 1 : vector<128x3xf32>, vector<128x3xf32>, vector<128x3xf32> -> vector<128x9xf32>
    %c0_15 = arith.constant 0 : index
    %c0_16 = arith.constant 0 : index
    %55 = vector.load %arg2[%c0_15, %c0_16] : memref<9x16xf32, #tpu.memory_space<vmem>>, vector<9x16xf32>
    %cst_17 = arith.constant dense<0.000000e+00> : vector<128x16xf32>
    %56 = tpu.matmul %54, %55, %cst_17 {dimension_numbers = #tpu.dot_dimension_numbers<[1], [0], [0], [1], [0, 0, 1, 1], [], []>} : vector<128x9xf32>, vector<9x16xf32>, vector<128x16xf32> -> vector<128x16xf32>
    %c0_18 = arith.constant 0 : index
    %c0_19 = arith.constant 0 : index
    %57 = vector.load %arg3[%c0_18, %c0_19] : memref<1x16xf32, #tpu.memory_space<vmem>>, vector<1x16xf32>
    %58 = vector.broadcast %57 : vector<1x16xf32> to vector<128x16xf32>
    %59 = arith.addf %56, %58 : vector<128x16xf32>
    %cst_20 = arith.constant 0.000000e+00 : f32
    %60 = vector.broadcast %cst_20 : f32 to vector<128x16xf32>
    %61 = arith.maximumf %59, %60 : vector<128x16xf32>
    %c0_21 = arith.constant 0 : index
    %c0_22 = arith.constant 0 : index
    %62 = vector.load %arg12[%c0_21, %c0_22] : memref<128x16xf32, #tpu.memory_space<vmem>>, vector<128x16xf32>
    tpu.vector_store %arg12[%c0_21, %c0_22], %61 {strides = array<i32>} : memref<128x16xf32, #tpu.memory_space<vmem>>, vector<128x16xf32>,
    %c0_23 = arith.constant 0 : index
    %c0_24 = arith.constant 0 : index
    %63 = tpu.strided_load %arg12[%c0_23, %c0_24] {strides = array<i32: 2, 1>} : memref<128x16xf32, #tpu.memory_space<vmem>>, vector<64x16xf32>
    %c1 = arith.constant 1 : index
    %c0_25 = arith.constant 0 : index
    %64 = tpu.strided_load %arg12[%c1, %c0_25] {strides = array<i32: 2, 1>} : memref<128x16xf32, #tpu.memory_space<vmem>>, vector<64x16xf32>
    %65 = arith.maximumf %63, %64 : vector<64x16xf32>
    %c8_26 = arith.constant 8 : index
    %c0_27 = arith.constant 0 : index
    %66 = vector.load %arg13[%c8_26, %c0_27] : memref<80x16xf32, #tpu.memory_space<vmem>>, vector<64x16xf32>
    tpu.vector_store %arg13[%c8_26, %c0_27], %65 {strides = array<i32>} : memref<80x16xf32, #tpu.memory_space<vmem>>, vector<64x16xf32>,
    %c7_28 = arith.constant 7 : index
    %c0_29 = arith.constant 0 : index
    %67 = vector.load %arg13[%c7_28, %c0_29] : memref<80x16xf32, #tpu.memory_space<vmem>>, vector<64x16xf32>
    %c9_30 = arith.constant 9 : index
    %c0_31 = arith.constant 0 : index
    %68 = vector.load %arg13[%c9_30, %c0_31] : memref<80x16xf32, #tpu.memory_space<vmem>>, vector<64x16xf32>
    %cst_32 = arith.constant 0.000000e+00 : f32
    %69 = vector.shape_cast %39 : vector<64x1xi1> to vector<64x1xi1>
    %70 = vector.broadcast %69 : vector<64x1xi1> to vector<64x16xi1>
    %71 = vector.broadcast %cst_32 : f32 to vector<64x16xf32>
    %72 = arith.select %70, %71, %67 : vector<64x16xi1>, vector<64x16xf32>
    %cst_33 = arith.constant 0.000000e+00 : f32
    %73 = vector.shape_cast %41 : vector<64x1xi1> to vector<64x1xi1>
    %74 = vector.broadcast %73 : vector<64x1xi1> to vector<64x16xi1>
    %75 = vector.broadcast %cst_33 : f32 to vector<64x16xf32>
    %76 = arith.select %74, %75, %68 : vector<64x16xi1>, vector<64x16xf32>
    %77 = tpu.concatenate %72, %65, %76 in 1 : vector<64x16xf32>, vector<64x16xf32>, vector<64x16xf32> -> vector<64x48xf32>
    %c0_34 = arith.constant 0 : index
    %c0_35 = arith.constant 0 : index
    %78 = vector.load %arg4[%c0_34, %c0_35] : memref<48x32xf32, #tpu.memory_space<vmem>>, vector<48x32xf32>
    %cst_36 = arith.constant dense<0.000000e+00> : vector<64x32xf32>
    %79 = tpu.matmul %77, %78, %cst_36 {dimension_numbers = #tpu.dot_dimension_numbers<[1], [0], [0], [1], [0, 0, 1, 1], [], []>} : vector<64x48xf32>, vector<48x32xf32>, vector<64x32xf32> -> vector<64x32xf32>
    %c0_37 = arith.constant 0 : index
    %c0_38 = arith.constant 0 : index
    %80 = vector.load %arg5[%c0_37, %c0_38] : memref<1x32xf32, #tpu.memory_space<vmem>>, vector<1x32xf32>
    %81 = vector.broadcast %80 : vector<1x32xf32> to vector<64x32xf32>
    %82 = arith.addf %79, %81 : vector<64x32xf32>
    %cst_39 = arith.constant 0.000000e+00 : f32
    %83 = vector.broadcast %cst_39 : f32 to vector<64x32xf32>
    %84 = arith.maximumf %82, %83 : vector<64x32xf32>
    %c0_40 = arith.constant 0 : index
    %c0_41 = arith.constant 0 : index
    %85 = vector.load %arg14[%c0_40, %c0_41] : memref<64x32xf32, #tpu.memory_space<vmem>>, vector<64x32xf32>
    tpu.vector_store %arg14[%c0_40, %c0_41], %84 {strides = array<i32>} : memref<64x32xf32, #tpu.memory_space<vmem>>, vector<64x32xf32>,
    %c0_42 = arith.constant 0 : index
    %c0_43 = arith.constant 0 : index
    %86 = tpu.strided_load %arg14[%c0_42, %c0_43] {strides = array<i32: 8, 1>} : memref<64x32xf32, #tpu.memory_space<vmem>>, vector<8x32xf32>
    %c1_44 = arith.constant 1 : index
    %c0_45 = arith.constant 0 : index
    %87 = tpu.strided_load %arg14[%c1_44, %c0_45] {strides = array<i32: 8, 1>} : memref<64x32xf32, #tpu.memory_space<vmem>>, vector<8x32xf32>
    %88 = arith.maximumf %86, %87 : vector<8x32xf32>
    %c2 = arith.constant 2 : index
    %c0_46 = arith.constant 0 : index
    %89 = tpu.strided_load %arg14[%c2, %c0_46] {strides = array<i32: 8, 1>} : memref<64x32xf32, #tpu.memory_space<vmem>>, vector<8x32xf32>
    %c3 = arith.constant 3 : index
    %c0_47 = arith.constant 0 : index
    %90 = tpu.strided_load %arg14[%c3, %c0_47] {strides = array<i32: 8, 1>} : memref<64x32xf32, #tpu.memory_space<vmem>>, vector<8x32xf32>
    %91 = arith.maximumf %89, %90 : vector<8x32xf32>
    %c4 = arith.constant 4 : index
    %c0_48 = arith.constant 0 : index
    %92 = tpu.strided_load %arg14[%c4, %c0_48] {strides = array<i32: 8, 1>} : memref<64x32xf32, #tpu.memory_space<vmem>>, vector<8x32xf32>
    %c5 = arith.constant 5 : index
    %c0_49 = arith.constant 0 : index
    %93 = tpu.strided_load %arg14[%c5, %c0_49] {strides = array<i32: 8, 1>} : memref<64x32xf32, #tpu.memory_space<vmem>>, vector<8x32xf32>
    %94 = arith.maximumf %92, %93 : vector<8x32xf32>
    %c6 = arith.constant 6 : index
    %c0_50 = arith.constant 0 : index
    %95 = tpu.strided_load %arg14[%c6, %c0_50] {strides = array<i32: 8, 1>} : memref<64x32xf32, #tpu.memory_space<vmem>>, vector<8x32xf32>
    %c7_51 = arith.constant 7 : index
    %c0_52 = arith.constant 0 : index
    %96 = tpu.strided_load %arg14[%c7_51, %c0_52] {strides = array<i32: 8, 1>} : memref<64x32xf32, #tpu.memory_space<vmem>>, vector<8x32xf32>
    %97 = arith.maximumf %95, %96 : vector<8x32xf32>
    %98 = tpu.concatenate %88, %91, %94, %97 in 1 : vector<8x32xf32>, vector<8x32xf32>, vector<8x32xf32>, vector<8x32xf32> -> vector<8x128xf32>
    %c0_53 = arith.constant 0 : index
    %c0_54 = arith.constant 0 : index
    %99 = vector.load %arg6[%c0_53, %c0_54] : memref<128x128xf32, #tpu.memory_space<vmem>>, vector<128x128xf32>
    %cst_55 = arith.constant dense<0.000000e+00> : vector<8x128xf32>
    %100 = tpu.matmul %98, %99, %cst_55 {dimension_numbers = #tpu.dot_dimension_numbers<[1], [0], [0], [1], [0, 0, 1, 1], [], []>} : vector<8x128xf32>, vector<128x128xf32>, vector<8x128xf32> -> vector<8x128xf32>
    %c0_56 = arith.constant 0 : index
    %c0_57 = arith.constant 0 : index
    %101 = vector.load %arg7[%c0_56, %c0_57] : memref<1x128xf32, #tpu.memory_space<vmem>>, vector<1x128xf32>
    %102 = vector.broadcast %101 : vector<1x128xf32> to vector<8x128xf32>
    %103 = arith.addf %100, %102 : vector<8x128xf32>
    %cst_58 = arith.constant 0.000000e+00 : f32
    %104 = vector.broadcast %cst_58 : f32 to vector<8x128xf32>
    %105 = arith.maximumf %103, %104 : vector<8x128xf32>
    %c0_59 = arith.constant 0 : index
    %c0_60 = arith.constant 0 : index
    %106 = vector.load %arg8[%c0_59, %c0_60] : memref<128x128xf32, #tpu.memory_space<vmem>>, vector<128x128xf32>
    %cst_61 = arith.constant dense<0.000000e+00> : vector<8x128xf32>
    %107 = tpu.matmul %105, %106, %cst_61 {dimension_numbers = #tpu.dot_dimension_numbers<[1], [0], [0], [1], [0, 0, 1, 1], [], []>} : vector<8x128xf32>, vector<128x128xf32>, vector<8x128xf32> -> vector<8x128xf32>
    %c0_62 = arith.constant 0 : index
    %c0_63 = arith.constant 0 : index
    %108 = vector.load %arg9[%c0_62, %c0_63] : memref<1x128xf32, #tpu.memory_space<vmem>>, vector<1x128xf32>
    %109 = vector.broadcast %108 : vector<1x128xf32> to vector<8x128xf32>
    %110 = arith.addf %107, %109 : vector<8x128xf32>
    %c0_64 = arith.constant 0 : index
    %c0_65 = arith.constant 0 : index
    %111 = vector.load %arg10[%c0_64, %c0_65] : memref<8x128xf32, #tpu.memory_space<vmem>>, vector<8x128xf32>
    tpu.vector_store %arg10[%c0_64, %c0_65], %110 {strides = array<i32>} : memref<8x128xf32, #tpu.memory_space<vmem>>, vector<8x128xf32>,
    return
  }
  func.func @transform_0(%arg0: i32) -> (i32, i32) {
    %c0_i32 = arith.constant 0 : i32
    %c0_i32_0 = arith.constant 0 : i32
    return %arg0, %c0_i32 : i32, i32
  }
  func.func @transform_1(%arg0: i32) -> (i32, i32) {
    %c0_i32 = arith.constant 0 : i32
    %c0_i32_0 = arith.constant 0 : i32
    %c0_i32_1 = arith.constant 0 : i32
    return %c0_i32, %c0_i32_0 : i32, i32
  }
  func.func @transform_2(%arg0: i32) -> (i32, i32) {
    %c0_i32 = arith.constant 0 : i32
    %c0_i32_0 = arith.constant 0 : i32
    %c0_i32_1 = arith.constant 0 : i32
    return %c0_i32, %c0_i32_0 : i32, i32
  }
  func.func @transform_3(%arg0: i32) -> (i32, i32) {
    %c0_i32 = arith.constant 0 : i32
    %c0_i32_0 = arith.constant 0 : i32
    %c0_i32_1 = arith.constant 0 : i32
    return %c0_i32, %c0_i32_0 : i32, i32
  }
  func.func @transform_4(%arg0: i32) -> (i32, i32) {
    %c0_i32 = arith.constant 0 : i32
    %c0_i32_0 = arith.constant 0 : i32
    %c0_i32_1 = arith.constant 0 : i32
    return %c0_i32, %c0_i32_0 : i32, i32
  }
  func.func @transform_5(%arg0: i32) -> (i32, i32) {
    %c0_i32 = arith.constant 0 : i32
    %c0_i32_0 = arith.constant 0 : i32
    %c0_i32_1 = arith.constant 0 : i32
    return %c0_i32, %c0_i32_0 : i32, i32
  }
  func.func @transform_6(%arg0: i32) -> (i32, i32) {
    %c0_i32 = arith.constant 0 : i32
    %c0_i32_0 = arith.constant 0 : i32
    %c0_i32_1 = arith.constant 0 : i32
    return %c0_i32, %c0_i32_0 : i32, i32
  }
  func.func @transform_7(%arg0: i32) -> (i32, i32) {
    %c0_i32 = arith.constant 0 : i32
    %c0_i32_0 = arith.constant 0 : i32
    %c0_i32_1 = arith.constant 0 : i32
    return %c0_i32, %c0_i32_0 : i32, i32
  }
  func.func @transform_8(%arg0: i32) -> (i32, i32) {
    %c0_i32 = arith.constant 0 : i32
    %c0_i32_0 = arith.constant 0 : i32
    %c0_i32_1 = arith.constant 0 : i32
    return %c0_i32, %c0_i32_0 : i32, i32
  }
  func.func @transform_9(%arg0: i32) -> (i32, i32) {
    %c0_i32 = arith.constant 0 : i32
    %c0_i32_0 = arith.constant 0 : i32
    return %arg0, %c0_i32 : i32, i32
  }
}

</mosaic_0001>

<llo_original>
// kernel: tpu_custom_call.1
$region0: #{tpu_custom_call.1}
  #allocation0 [shape = 'u32[]', space=smem, size = 0x4, offset = 0x4, fixed_abs, tag = 'smem constant byte address 0x4 - core index']
  #allocation1 [shape = 'u32[72,128]{1,0:T(1,128)}', space=vmem, size = 0x9000, scoped, tag = 'internal scratch']
  #allocation2 [shape = 'f32[144,3]{1,0:T(8,128)}', space=vmem, size = 0x12000, scoped, tag = 'scratch operand']
  #allocation3 [shape = 'f32[128,16]{1,0:T(8,128)}', space=vmem, size = 0x10000, scoped, tag = 'scratch operand']
  #allocation4 [shape = 'f32[80,16]{1,0:T(8,128)}', space=vmem, size = 0xa000, scoped, tag = 'scratch operand']
  #allocation5 [shape = 'f32[64,32]{1,0:T(8,128)}', space=vmem, size = 0x8000, scoped, tag = 'scratch operand']
  %s0 = inlined_call_operand.vmem [shape: f32[128,3], index: 0, kind: input, shape index: {}]
  %s1 = inlined_call_operand.vmem [shape: f32[9,16], index: 1, kind: input, shape index: {}]
  %s2 = inlined_call_operand.vmem [shape: f32[1,16], index: 2, kind: input, shape index: {}]
  %s3 = inlined_call_operand.vmem [shape: f32[48,32], index: 3, kind: input, shape index: {}]
  %s4 = inlined_call_operand.vmem [shape: f32[1,32], index: 4, kind: input, shape index: {}]
  %s5 = inlined_call_operand.vmem [shape: f32[128,128], index: 5, kind: input, shape index: {}]
  %s6 = inlined_call_operand.vmem [shape: f32[1,128], index: 6, kind: input, shape index: {}]
  %s7 = inlined_call_operand.hbm [shape: f32[128,128], index: 7, kind: input, shape index: {}]
  %s8 = inlined_call_operand.vmem [shape: f32[1,128], index: 8, kind: input, shape index: {}]
  %s9 = inlined_call_operand.hbm [shape: f32[8,128], index: 9, kind: output, shape index: {}]
  %s10 = sld [smem:[#allocation0]]
  $region50: #{tpu_custom_call.1} parent=0
    _
  %s12 = ssub.s32 1, %s10
  %s13 = scalar_select 0, %s12, %s10
  $region1: #{tpu_custom_call.1} parent=0
    #allocation6 [shape = 'u8[65536]{0}', space=vmem, size = 0x10000, scoped, tag = 'input window, operand 7, single buffered']
    #allocation7 [shape = 's32[1]{0}', space=sflag, size = 0x4, scoped, tag = 'scoped memory for tpu_custom_call.1']
    #allocation8 [shape = 's32[1]{0}', space=sflag, size = 0x4, scoped, tag = 'scoped memory for tpu_custom_call.1']
    #allocation9 [shape = 'u8[4096]{0}', space=vmem, size = 0x1000, scoped, tag = 'output window, operand 0, single buffered']
    %14 = vsyncpa [#allocation7], 0
    %15 = vsyncpa [#allocation8], 0
    // Predicated region
    $region2: #{tpu_custom_call.1} parent=1 // pred_check
      _
    $region3: #{tpu_custom_call.1} parent=1 // pred_check_branch
      %17 = sbr.rel (0) target = $region5
    $region4: #{tpu_custom_call.1} parent=1 // pred_region
      _
    $region5: #{tpu_custom_call.1} parent=1 // pred_fallthru
      _
    // Predicated region
    $region6: #{tpu_custom_call.1} parent=1 // pred_check
      _
    $region7: #{tpu_custom_call.1} parent=1 // pred_check_branch
      %19 = sbr.rel (0) target = $region9
    $region8: #{tpu_custom_call.1} parent=1 // pred_region
      _
    $region9: #{tpu_custom_call.1} parent=1 // pred_fallthru
      _
    // Predicated region
    $region10: #{tpu_custom_call.1} parent=1 // pred_check
      _
    $region11: #{tpu_custom_call.1} parent=1 // pred_check_branch
      %21 = sbr.rel (0) target = $region13
    $region12: #{tpu_custom_call.1} parent=1 // pred_region
      _
    $region13: #{tpu_custom_call.1} parent=1 // pred_fallthru
      _
    // Predicated region
    $region14: #{tpu_custom_call.1} parent=1 // pred_check
      _
    $region15: #{tpu_custom_call.1} parent=1 // pred_check_branch
      %23 = sbr.rel (0) target = $region17
    $region16: #{tpu_custom_call.1} parent=1 // pred_region
      _
    $region17: #{tpu_custom_call.1} parent=1 // pred_fallthru
      _
    // Predicated region
    $region18: #{tpu_custom_call.1} parent=1 // pred_check
      _
    $region19: #{tpu_custom_call.1} parent=1 // pred_check_branch
      %25 = sbr.rel (0) target = $region21
    $region20: #{tpu_custom_call.1} parent=1 // pred_region
      _
    $region21: #{tpu_custom_call.1} parent=1 // pred_fallthru
      _
    // Predicated region
    $region22: #{tpu_custom_call.1} parent=1 // pred_check
      _
    $region23: #{tpu_custom_call.1} parent=1 // pred_check_branch
      %27 = sbr.rel (0) target = $region25
    $region24: #{tpu_custom_call.1} parent=1 // pred_region
      _
    $region25: #{tpu_custom_call.1} parent=1 // pred_fallthru
      _
    // Predicated region
    $region26: #{tpu_custom_call.1} parent=1 // pred_check
      _
    $region27: #{tpu_custom_call.1} parent=1 // pred_check_branch
      %29 = sbr.rel (0) target = $region29
    $region28: #{tpu_custom_call.1} parent=1 // pred_region
      _
    $region29: #{tpu_custom_call.1} parent=1 // pred_fallthru
      _
    // Predicated region
    $region30: #{tpu_custom_call.1} parent=1 // pred_check
      _
    $region31: #{tpu_custom_call.1} parent=1 // pred_check_branch
      %31 = sbr.rel (0) target = $region33
    $region32: #{tpu_custom_call.1} parent=1 // pred_region
      %33 = vsyncadd [#allocation7], 0
      %s34 = sshll.u32 %s7, 4
      %s35 = int_to_ptr.hbm [resolvable:$true] %s34
      %s36 = sshll.u32 [#allocation6], 4
      %s37 = int_to_ptr.vmem [resolvable:$true] %s36
      %42 = dma.hbm_to_vmem [thread:$0]  %s35, 2048, %s37, [#allocation7], 128, 128, 8
    $region33: #{tpu_custom_call.1} parent=1 // pred_fallthru
      _
    // Predicated region
    $region34: #{tpu_custom_call.1} parent=1 // pred_check
      _
    $region35: #{tpu_custom_call.1} parent=1 // pred_check_branch
      %44 = sbr.rel (0) target = $region37
    $region36: #{tpu_custom_call.1} parent=1 // pred_region
      _
    $region37: #{tpu_custom_call.1} parent=1 // pred_fallthru
      _
    // Predicated region
    $region38: #{tpu_custom_call.1} parent=1 // pred_check
      _
    $region39: #{tpu_custom_call.1} parent=1 // pred_check_branch
      %46 = sbr.rel (0) target = $region41
    $region40: #{tpu_custom_call.1} parent=1 // pred_region
      %48 = dma.done [#allocation7], 2048
    $region41: #{tpu_custom_call.1} parent=1 // pred_fallthru
      _
    %v49 = vlaneseq
    %v50 = vshrl.u32 %v49, 7
    %v51 = vadd.s32 %v50, 8
    %v52 = vadd.s32 %v50, 16
    %v53 = vadd.s32 %v50, 24
    %v54 = vadd.s32 %v50, 32
    %v55 = vadd.s32 %v50, 40
    %v56 = vadd.s32 %v50, 48
    %v57 = vadd.s32 %v50, 56
    %v58 = vadd.s32 %v50, 64
    %v59 = vadd.s32 %v50, 72
    %v60 = vadd.s32 %v50, 80
    %v61 = vadd.s32 %v50, 88
    %v62 = vadd.s32 %v50, 96
    %v63 = vadd.s32 %v50, 104
    %v64 = vadd.s32 %v50, 112
    %v65 = vadd.s32 %v50, 120
    %vm66 = vcmp.lt.s32.totalorder %v50, 0
    %v67 = vsub.s32 0, %v50
    %v68 = vsel %vm66, %v67, %v50
    %v69 = vshrl.u32 %v68, 4
    %v70 = vand.u32 %v68, 15
    %v71 = vsub.s32 0, %v70
    %v72 = vsel %vm66, %v71, %v70
    %vm73 = vcmp.lt.s32.totalorder %v51, 0
    %v74 = vsub.s32 0, %v51
    %v75 = vsel %vm73, %v74, %v51
    %v76 = vshrl.u32 %v75, 4
    %v77 = vand.u32 %v75, 15
    %v78 = vsub.s32 0, %v77
    %v79 = vsel %vm73, %v78, %v77
    %vm80 = vcmp.lt.s32.totalorder %v52, 0
    %v81 = vsub.s32 0, %v52
    %v82 = vsel %vm80, %v81, %v52
    %v83 = vshrl.u32 %v82, 4
    %v84 = vand.u32 %v82, 15
    %v85 = vsub.s32 0, %v84
    %v86 = vsel %vm80, %v85, %v84
    %vm87 = vcmp.lt.s32.totalorder %v53, 0
    %v88 = vsub.s32 0, %v53
    %v89 = vsel %vm87, %v88, %v53
    %v90 = vshrl.u32 %v89, 4
    %v91 = vand.u32 %v89, 15
    %v92 = vsub.s32 0, %v91
    %v93 = vsel %vm87, %v92, %v91
    %vm94 = vcmp.lt.s32.totalorder %v54, 0
    %v95 = vsub.s32 0, %v54
    %v96 = vsel %vm94, %v95, %v54
    %v97 = vshrl.u32 %v96, 4
    %v98 = vand.u32 %v96, 15
    %v99 = vsub.s32 0, %v98
    %v100 = vsel %vm94, %v99, %v98
    %vm101 = vcmp.lt.s32.totalorder %v55, 0
    %v102 = vsub.s32 0, %v55
    %v103 = vsel %vm101, %v102, %v55
    %v104 = vshrl.u32 %v103, 4
    %v105 = vand.u32 %v103, 15
    %v106 = vsub.s32 0, %v105
    %v107 = vsel %vm101, %v106, %v105
    %vm108 = vcmp.lt.s32.totalorder %v56, 0
    %v109 = vsub.s32 0, %v56
    %v110 = vsel %vm108, %v109, %v56
    %v111 = vshrl.u32 %v110, 4
    %v112 = vand.u32 %v110, 15
    %v113 = vsub.s32 0, %v112
    %v114 = vsel %vm108, %v113, %v112
    %vm115 = vcmp.lt.s32.totalorder %v57, 0
    %v116 = vsub.s32 0, %v57
    %v117 = vsel %vm115, %v116, %v57
    %v118 = vshrl.u32 %v117, 4
    %v119 = vand.u32 %v117, 15
    %v120 = vsub.s32 0, %v119
    %v121 = vsel %vm115, %v120, %v119
    %vm122 = vcmp.lt.s32.totalorder %v58, 0
    %v123 = vsub.s32 0, %v58
    %v124 = vsel %vm122, %v123, %v58
    %v125 = vshrl.u32 %v124, 4
    %v126 = vand.u32 %v124, 15
    %v127 = vsub.s32 0, %v126
    %v128 = vsel %vm122, %v127, %v126
    %vm129 = vcmp.lt.s32.totalorder %v59, 0
    %v130 = vsub.s32 0, %v59
    %v131 = vsel %vm129, %v130, %v59
    %v132 = vshrl.u32 %v131, 4
    %v133 = vand.u32 %v131, 15
    %v134 = vsub.s32 0, %v133
    %v135 = vsel %vm129, %v134, %v133
    %vm136 = vcmp.lt.s32.totalorder %v60, 0
    %v137 = vsub.s32 0, %v60
    %v138 = vsel %vm136, %v137, %v60
    %v139 = vshrl.u32 %v138, 4
    %v140 = vand.u32 %v138, 15
    %v141 = vsub.s32 0, %v140
    %v142 = vsel %vm136, %v141, %v140
    %vm143 = vcmp.lt.s32.totalorder %v61, 0
    %v144 = vsub.s32 0, %v61
    %v145 = vsel %vm143, %v144, %v61
    %v146 = vshrl.u32 %v145, 4
    %v147 = vand.u32 %v145, 15
    %v148 = vsub.s32 0, %v147
    %v149 = vsel %vm143, %v148, %v147
    %vm150 = vcmp.lt.s32.totalorder %v62, 0
    %v151 = vsub.s32 0, %v62
    %v152 = vsel %vm150, %v151, %v62
    %v153 = vshrl.u32 %v152, 4
    %v154 = vand.u32 %v152, 15
    %v155 = vsub.s32 0, %v154
    %v156 = vsel %vm150, %v155, %v154
    %vm157 = vcmp.lt.s32.totalorder %v63, 0
    %v158 = vsub.s32 0, %v63
    %v159 = vsel %vm157, %v158, %v63
    %v160 = vshrl.u32 %v159, 4
    %v161 = vand.u32 %v159, 15
    %v162 = vsub.s32 0, %v161
    %v163 = vsel %vm157, %v162, %v161
    %vm164 = vcmp.lt.s32.totalorder %v64, 0
    %v165 = vsub.s32 0, %v64
    %v166 = vsel %vm164, %v165, %v64
    %v167 = vshrl.u32 %v166, 4
    %v168 = vand.u32 %v166, 15
    %v169 = vsub.s32 0, %v168
    %v170 = vsel %vm164, %v169, %v168
    %vm171 = vcmp.lt.s32.totalorder %v65, 0
    %v172 = vsub.s32 0, %v65
    %v173 = vsel %vm171, %v172, %v65
    %v174 = vshrl.u32 %v173, 4
    %v175 = vand.u32 %v173, 15
    %v176 = vsub.s32 0, %v175
    %v177 = vsel %vm171, %v176, %v175
    %vm178 = vcmp.ne.s32.totalorder %v72, 0
    %vm179 = vcmp.ne.s32.totalorder %v79, 0
    %vm180 = vcmp.ne.s32.totalorder %v86, 0
    %vm181 = vcmp.ne.s32.totalorder %v93, 0
    %vm182 = vcmp.ne.s32.totalorder %v100, 0
    %vm183 = vcmp.ne.s32.totalorder %v107, 0
    %vm184 = vcmp.ne.s32.totalorder %v114, 0
    %vm185 = vcmp.ne.s32.totalorder %v121, 0
    %vm186 = vcmp.ne.s32.totalorder %v128, 0
    %vm187 = vcmp.ne.s32.totalorder %v135, 0
    %vm188 = vcmp.ne.s32.totalorder %v142, 0
    %vm189 = vcmp.ne.s32.totalorder %v149, 0
    %vm190 = vcmp.ne.s32.totalorder %v156, 0
    %vm191 = vcmp.ne.s32.totalorder %v163, 0
    %vm192 = vcmp.ne.s32.totalorder %v170, 0
    %vm193 = vcmp.ne.s32.totalorder %v177, 0
    %vm194 = vcmp.lt.s32.totalorder %v72, 0
    %vm195 = vcmp.lt.s32.totalorder %v79, 0
    %vm196 = vcmp.lt.s32.totalorder %v86, 0
    %vm197 = vcmp.lt.s32.totalorder %v93, 0
    %vm198 = vcmp.lt.s32.totalorder %v100, 0
    %vm199 = vcmp.lt.s32.totalorder %v107, 0
    %vm200 = vcmp.lt.s32.totalorder %v114, 0
    %vm201 = vcmp.lt.s32.totalorder %v121, 0
    %vm202 = vcmp.lt.s32.totalorder %v128, 0
    %vm203 = vcmp.lt.s32.totalorder %v135, 0
    %vm204 = vcmp.lt.s32.totalorder %v142, 0
    %vm205 = vcmp.lt.s32.totalorder %v149, 0
    %vm206 = vcmp.lt.s32.totalorder %v156, 0
    %vm207 = vcmp.lt.s32.totalorder %v163, 0
    %vm208 = vcmp.lt.s32.totalorder %v170, 0
    %vm209 = vcmp.lt.s32.totalorder %v177, 0
    %vm210 = vmand %vm194, %vm178
    %vm211 = vmand %vm195, %vm179
    %vm212 = vmand %vm196, %vm180
    %vm213 = vmand %vm197, %vm181
    %vm214 = vmand %vm198, %vm182
    %vm215 = vmand %vm199, %vm183
    %vm216 = vmand %vm200, %vm184
    %vm217 = vmand %vm201, %vm185
    %vm218 = vmand %vm202, %vm186
    %vm219 = vmand %vm203, %vm187
    %vm220 = vmand %vm204, %vm188
    %vm221 = vmand %vm205, %vm189
    %vm222 = vmand %vm206, %vm190
    %vm223 = vmand %vm207, %vm191
    %vm224 = vmand %vm208, %vm192
    %vm225 = vmand %vm209, %vm193
    %v226 = vadd.s32 %v72, 16
    %v227 = vadd.s32 %v79, 16
    %v228 = vadd.s32 %v86, 16
    %v229 = vadd.s32 %v93, 16
    %v230 = vadd.s32 %v100, 16
    %v231 = vadd.s32 %v107, 16
    %v232 = vadd.s32 %v114, 16
    %v233 = vadd.s32 %v121, 16
    %v234 = vadd.s32 %v128, 16
    %v235 = vadd.s32 %v135, 16
    %v236 = vadd.s32 %v142, 16
    %v237 = vadd.s32 %v149, 16
    %v238 = vadd.s32 %v156, 16
    %v239 = vadd.s32 %v163, 16
    %v240 = vadd.s32 %v170, 16
    %v241 = vadd.s32 %v177, 16
    %v242 = vsel %vm210, %v226, %v72
    %v243 = vsel %vm211, %v227, %v79
    %v244 = vsel %vm212, %v228, %v86
    %v245 = vsel %vm213, %v229, %v93
    %v246 = vsel %vm214, %v230, %v100
    %v247 = vsel %vm215, %v231, %v107
    %v248 = vsel %vm216, %v232, %v114
    %v249 = vsel %vm217, %v233, %v121
    %v250 = vsel %vm218, %v234, %v128
    %v251 = vsel %vm219, %v235, %v135
    %v252 = vsel %vm220, %v236, %v142
    %v253 = vsel %vm221, %v237, %v149
    %v254 = vsel %vm222, %v238, %v156
    %v255 = vsel %vm223, %v239, %v163
    %v256 = vsel %vm224, %v240, %v170
    %v257 = vsel %vm225, %v241, %v177
    %vm258 = vcmp.eq.s32.totalorder %v242, 0
    %vm259 = vcmp.eq.s32.totalorder %v243, 0
    %vm260 = vcmp.eq.s32.totalorder %v244, 0
    %vm261 = vcmp.eq.s32.totalorder %v245, 0
    %vm262 = vcmp.eq.s32.totalorder %v246, 0
    %vm263 = vcmp.eq.s32.totalorder %v247, 0
    %vm264 = vcmp.eq.s32.totalorder %v248, 0
    %vm265 = vcmp.eq.s32.totalorder %v249, 0
    %vm266 = vcmp.eq.s32.totalorder %v250, 0
    %vm267 = vcmp.eq.s32.totalorder %v251, 0
    %vm268 = vcmp.eq.s32.totalorder %v252, 0
    %vm269 = vcmp.eq.s32.totalorder %v253, 0
    %vm270 = vcmp.eq.s32.totalorder %v254, 0
    %vm271 = vcmp.eq.s32.totalorder %v255, 0
    %vm272 = vcmp.eq.s32.totalorder %v256, 0
    %vm273 = vcmp.eq.s32.totalorder %v257, 0
    %vm274 = vcmp.eq.s32.totalorder %v242, 15
    %vm275 = vcmp.eq.s32.totalorder %v243, 15
    %vm276 = vcmp.eq.s32.totalorder %v244, 15
    %vm277 = vcmp.eq.s32.totalorder %v245, 15
    %vm278 = vcmp.eq.s32.totalorder %v246, 15
    %vm279 = vcmp.eq.s32.totalorder %v247, 15
    %vm280 = vcmp.eq.s32.totalorder %v248, 15
    %vm281 = vcmp.eq.s32.totalorder %v249, 15
    %vm282 = vcmp.eq.s32.totalorder %v250, 15
    %vm283 = vcmp.eq.s32.totalorder %v251, 15
    %vm284 = vcmp.eq.s32.totalorder %v252, 15
    %vm285 = vcmp.eq.s32.totalorder %v253, 15
    %vm286 = vcmp.eq.s32.totalorder %v254, 15
    %vm287 = vcmp.eq.s32.totalorder %v255, 15
    %vm288 = vcmp.eq.s32.totalorder %v256, 15
    %vm289 = vcmp.eq.s32.totalorder %v257, 15
    %vm290 = vcmp.lt.s32.totalorder %v50, 0
    %v291 = vsub.s32 0, %v50
    %v292 = vsel %vm290, %v291, %v50
    %v293 = vshrl.u32 %v292, 3
    %v294 = vand.u32 %v292, 7
    %v295 = vsub.s32 0, %v294
    %v296 = vsel %vm290, %v295, %v294
    %vm297 = vcmp.lt.s32.totalorder %v51, 0
    %v298 = vsub.s32 0, %v51
    %v299 = vsel %vm297, %v298, %v51
    %v300 = vshrl.u32 %v299, 3
    %v301 = vand.u32 %v299, 7
    %v302 = vsub.s32 0, %v301
    %v303 = vsel %vm297, %v302, %v301
    %vm304 = vcmp.lt.s32.totalorder %v52, 0
    %v305 = vsub.s32 0, %v52
    %v306 = vsel %vm304, %v305, %v52
    %v307 = vshrl.u32 %v306, 3
    %v308 = vand.u32 %v306, 7
    %v309 = vsub.s32 0, %v308
    %v310 = vsel %vm304, %v309, %v308
    %vm311 = vcmp.lt.s32.totalorder %v53, 0
    %v312 = vsub.s32 0, %v53
    %v313 = vsel %vm311, %v312, %v53
    %v314 = vshrl.u32 %v313, 3
    %v315 = vand.u32 %v313, 7
    %v316 = vsub.s32 0, %v315
    %v317 = vsel %vm311, %v316, %v315
    %vm318 = vcmp.lt.s32.totalorder %v54, 0
    %v319 = vsub.s32 0, %v54
    %v320 = vsel %vm318, %v319, %v54
    %v321 = vshrl.u32 %v320, 3
    %v322 = vand.u32 %v320, 7
    %v323 = vsub.s32 0, %v322
    %v324 = vsel %vm318, %v323, %v322
    %vm325 = vcmp.lt.s32.totalorder %v55, 0
    %v326 = vsub.s32 0, %v55
    %v327 = vsel %vm325, %v326, %v55
    %v328 = vshrl.u32 %v327, 3
    %v329 = vand.u32 %v327, 7
    %v330 = vsub.s32 0, %v329
    %v331 = vsel %vm325, %v330, %v329
    %vm332 = vcmp.lt.s32.totalorder %v56, 0
    %v333 = vsub.s32 0, %v56
    %v334 = vsel %vm332, %v333, %v56
    %v335 = vshrl.u32 %v334, 3
    %v336 = vand.u32 %v334, 7
    %v337 = vsub.s32 0, %v336
    %v338 = vsel %vm332, %v337, %v336
    %vm339 = vcmp.lt.s32.totalorder %v57, 0
    %v340 = vsub.s32 0, %v57
    %v341 = vsel %vm339, %v340, %v57
    %v342 = vshrl.u32 %v341, 3
    %v343 = vand.u32 %v341, 7
    %v344 = vsub.s32 0, %v343
    %v345 = vsel %vm339, %v344, %v343
    %vm346 = vcmp.ne.s32.totalorder %v296, 0
    %vm347 = vcmp.ne.s32.totalorder %v303, 0
    %vm348 = vcmp.ne.s32.totalorder %v310, 0
    %vm349 = vcmp.ne.s32.totalorder %v317, 0
    %vm350 = vcmp.ne.s32.totalorder %v324, 0
    %vm351 = vcmp.ne.s32.totalorder %v331, 0
    %vm352 = vcmp.ne.s32.totalorder %v338, 0
    %vm353 = vcmp.ne.s32.totalorder %v345, 0
    %vm354 = vcmp.lt.s32.totalorder %v296, 0
    %vm355 = vcmp.lt.s32.totalorder %v303, 0
    %vm356 = vcmp.lt.s32.totalorder %v310, 0
    %vm357 = vcmp.lt.s32.totalorder %v317, 0
    %vm358 = vcmp.lt.s32.totalorder %v324, 0
    %vm359 = vcmp.lt.s32.totalorder %v331, 0
    %vm360 = vcmp.lt.s32.totalorder %v338, 0
    %vm361 = vcmp.lt.s32.totalorder %v345, 0
    %vm362 = vmand %vm354, %vm346
    %vm363 = vmand %vm355, %vm347
    %vm364 = vmand %vm356, %vm348
    %vm365 = vmand %vm357, %vm349
    %vm366 = vmand %vm358, %vm350
    %vm367 = vmand %vm359, %vm351
    %vm368 = vmand %vm360, %vm352
    %vm369 = vmand %vm361, %vm353
    %v370 = vadd.s32 %v296, 8
    %v371 = vadd.s32 %v303, 8
    %v372 = vadd.s32 %v310, 8
    %v373 = vadd.s32 %v317, 8
    %v374 = vadd.s32 %v324, 8
    %v375 = vadd.s32 %v331, 8
    %v376 = vadd.s32 %v338, 8
    %v377 = vadd.s32 %v345, 8
    %v378 = vsel %vm362, %v370, %v296
    %v379 = vsel %vm363, %v371, %v303
    %v380 = vsel %vm364, %v372, %v310
    %v381 = vsel %vm365, %v373, %v317
    %v382 = vsel %vm366, %v374, %v324
    %v383 = vsel %vm367, %v375, %v331
    %v384 = vsel %vm368, %v376, %v338
    %v385 = vsel %vm369, %v377, %v345
    %vm386 = vcmp.eq.s32.totalorder %v378, 0
    %vm387 = vcmp.eq.s32.totalorder %v379, 0
    %vm388 = vcmp.eq.s32.totalorder %v380, 0
    %vm389 = vcmp.eq.s32.totalorder %v381, 0
    %vm390 = vcmp.eq.s32.totalorder %v382, 0
    %vm391 = vcmp.eq.s32.totalorder %v383, 0
    %vm392 = vcmp.eq.s32.totalorder %v384, 0
    %vm393 = vcmp.eq.s32.totalorder %v385, 0
    %vm394 = vcmp.eq.s32.totalorder %v378, 7
    %vm395 = vcmp.eq.s32.totalorder %v379, 7
    %vm396 = vcmp.eq.s32.totalorder %v380, 7
    %vm397 = vcmp.eq.s32.totalorder %v381, 7
    %vm398 = vcmp.eq.s32.totalorder %v382, 7
    %vm399 = vcmp.eq.s32.totalorder %v383, 7
    %vm400 = vcmp.eq.s32.totalorder %v384, 7
    %vm401 = vcmp.eq.s32.totalorder %v385, 7
    %v402 = vld [vmem:[%s0] sm:$0xff]
    %v403 = vld [vmem:[%s0 + $0x8] sm:$0xff]
    %v404 = vld [vmem:[%s0 + $0x10] sm:$0xff]
    %v405 = vld [vmem:[%s0 + $0x18] sm:$0xff]
    %v406 = vld [vmem:[%s0 + $0x20] sm:$0xff]
    %v407 = vld [vmem:[%s0 + $0x28] sm:$0xff]
    %v408 = vld [vmem:[%s0 + $0x30] sm:$0xff]
    %v409 = vld [vmem:[%s0 + $0x38] sm:$0xff]
    %v410 = vld [vmem:[%s0 + $0x40] sm:$0xff]
    %v411 = vld [vmem:[%s0 + $0x48] sm:$0xff]
    %v412 = vld [vmem:[%s0 + $0x50] sm:$0xff]
    %v413 = vld [vmem:[%s0 + $0x58] sm:$0xff]
    %v414 = vld [vmem:[%s0 + $0x60] sm:$0xff]
    %v415 = vld [vmem:[%s0 + $0x68] sm:$0xff]
    %v416 = vld [vmem:[%s0 + $0x70] sm:$0xff]
    %v417 = vld [vmem:[%s0 + $0x78] sm:$0xff]
    %vm418 = vcmask 23552
    %419 = vst.msk [vmem:[#allocation2 + $0x8] sm:$0xff] %vm418, %v402
    %420 = vst.msk [vmem:[#allocation2 + $0x10] sm:$0xff] %vm418, %v403
    %421 = vst.msk [vmem:[#allocation2 + $0x18] sm:$0xff] %vm418, %v404
    %422 = vst.msk [vmem:[#allocation2 + $0x20] sm:$0xff] %vm418, %v405
    %423 = vst.msk [vmem:[#allocation2 + $0x28] sm:$0xff] %vm418, %v406
    %424 = vst.msk [vmem:[#allocation2 + $0x30] sm:$0xff] %vm418, %v407
    %425 = vst.msk [vmem:[#allocation2 + $0x38] sm:$0xff] %vm418, %v408
    %426 = vst.msk [vmem:[#allocation2 + $0x40] sm:$0xff] %vm418, %v409
    %427 = vst.msk [vmem:[#allocation2 + $0x48] sm:$0xff] %vm418, %v410
    %428 = vst.msk [vmem:[#allocation2 + $0x50] sm:$0xff] %vm418, %v411
    %429 = vst.msk [vmem:[#allocation2 + $0x58] sm:$0xff] %vm418, %v412
    %430 = vst.msk [vmem:[#allocation2 + $0x60] sm:$0xff] %vm418, %v413
    %431 = vst.msk [vmem:[#allocation2 + $0x68] sm:$0xff] %vm418, %v414
    %432 = vst.msk [vmem:[#allocation2 + $0x70] sm:$0xff] %vm418, %v415
    %433 = vst.msk [vmem:[#allocation2 + $0x78] sm:$0xff] %vm418, %v416
    %434 = vst.msk [vmem:[#allocation2 + $0x80] sm:$0xff] %vm418, %v417
    %v435 = vld [vmem:[#allocation2 + $0x7] sm:$0xff]
    %v436 = vld [vmem:[#allocation2 + $0xf] sm:$0xff]
    %v437 = vld [vmem:[#allocation2 + $0x17] sm:$0xff]
    %v438 = vld [vmem:[#allocation2 + $0x1f] sm:$0xff]
    %v439 = vld [vmem:[#allocation2 + $0x27] sm:$0xff]
    %v440 = vld [vmem:[#allocation2 + $0x2f] sm:$0xff]
    %v441 = vld [vmem:[#allocation2 + $0x37] sm:$0xff]
    %v442 = vld [vmem:[#allocation2 + $0x3f] sm:$0xff]
    %v443 = vld [vmem:[#allocation2 + $0x47] sm:$0xff]
    %v444 = vld [vmem:[#allocation2 + $0x4f] sm:$0xff]
    %v445 = vld [vmem:[#allocation2 + $0x57] sm:$0xff]
    %v446 = vld [vmem:[#allocation2 + $0x5f] sm:$0xff]
    %v447 = vld [vmem:[#allocation2 + $0x67] sm:$0xff]
    %v448 = vld [vmem:[#allocation2 + $0x6f] sm:$0xff]
    %v449 = vld [vmem:[#allocation2 + $0x77] sm:$0xff]
    %v450 = vld [vmem:[#allocation2 + $0x7f] sm:$0xff]
    %v451 = vld [vmem:[#allocation2 + $0x9] sm:$0xff]
    %v452 = vld [vmem:[#allocation2 + $0x11] sm:$0xff]
    %v453 = vld [vmem:[#allocation2 + $0x19] sm:$0xff]
    %v454 = vld [vmem:[#allocation2 + $0x21] sm:$0xff]
    %v455 = vld [vmem:[#allocation2 + $0x29] sm:$0xff]
    %v456 = vld [vmem:[#allocation2 + $0x31] sm:$0xff]
    %v457 = vld [vmem:[#allocation2 + $0x39] sm:$0xff]
    %v458 = vld [vmem:[#allocation2 + $0x41] sm:$0xff]
    %v459 = vld [vmem:[#allocation2 + $0x49] sm:$0xff]
    %v460 = vld [vmem:[#allocation2 + $0x51] sm:$0xff]
    %v461 = vld [vmem:[#allocation2 + $0x59] sm:$0xff]
    %v462 = vld [vmem:[#allocation2 + $0x61] sm:$0xff]
    %v463 = vld [vmem:[#allocation2 + $0x69] sm:$0xff]
    %v464 = vld [vmem:[#allocation2 + $0x71] sm:$0xff]
    %v465 = vld [vmem:[#allocation2 + $0x79] sm:$0xff]
    %v466 = vld [vmem:[#allocation2 + $0x81] sm:$0xff]
    %v467 = vsel %vm258, 1, 0
    %v468 = vsel %vm259, 1, 0
    %v469 = vsel %vm260, 1, 0
    %v470 = vsel %vm261, 1, 0
    %v471 = vsel %vm262, 1, 0
    %v472 = vsel %vm263, 1, 0
    %v473 = vsel %vm264, 1, 0
    %v474 = vsel %vm265, 1, 0
    %v475 = vsel %vm266, 1, 0
    %v476 = vsel %vm267, 1, 0
    %v477 = vsel %vm268, 1, 0
    %v478 = vsel %vm269, 1, 0
    %v479 = vsel %vm270, 1, 0
    %v480 = vsel %vm271, 1, 0
    %v481 = vsel %vm272, 1, 0
    %v482 = vsel %vm273, 1, 0
    %vm483 = vcmp.eq.s32.totalorder %v467, 1
    %vm484 = vcmp.eq.s32.totalorder %v468, 1
    %vm485 = vcmp.eq.s32.totalorder %v469, 1
    %vm486 = vcmp.eq.s32.totalorder %v470, 1
    %vm487 = vcmp.eq.s32.totalorder %v471, 1
    %vm488 = vcmp.eq.s32.totalorder %v472, 1
    %vm489 = vcmp.eq.s32.totalorder %v473, 1
    %vm490 = vcmp.eq.s32.totalorder %v474, 1
    %vm491 = vcmp.eq.s32.totalorder %v475, 1
    %vm492 = vcmp.eq.s32.totalorder %v476, 1
    %vm493 = vcmp.eq.s32.totalorder %v477, 1
    %vm494 = vcmp.eq.s32.totalorder %v478, 1
    %vm495 = vcmp.eq.s32.totalorder %v479, 1
    %vm496 = vcmp.eq.s32.totalorder %v480, 1
    %vm497 = vcmp.eq.s32.totalorder %v481, 1
    %vm498 = vcmp.eq.s32.totalorder %v482, 1
    %v499 = vsel %vm483, 0.0, %v435
    %v500 = vsel %vm484, 0.0, %v436
    %v501 = vsel %vm485, 0.0, %v437
    %v502 = vsel %vm486, 0.0, %v438
    %v503 = vsel %vm487, 0.0, %v439
    %v504 = vsel %vm488, 0.0, %v440
    %v505 = vsel %vm489, 0.0, %v441
    %v506 = vsel %vm490, 0.0, %v442
    %v507 = vsel %vm491, 0.0, %v443
    %v508 = vsel %vm492, 0.0, %v444
    %v509 = vsel %vm493, 0.0, %v445
    %v510 = vsel %vm494, 0.0, %v446
    %v511 = vsel %vm495, 0.0, %v447
    %v512 = vsel %vm496, 0.0, %v448
    %v513 = vsel %vm497, 0.0, %v449
    %v514 = vsel %vm498, 0.0, %v450
    %v515 = vsel %vm274, 1, 0
    %v516 = vsel %vm275, 1, 0
    %v517 = vsel %vm276, 1, 0
    %v518 = vsel %vm277, 1, 0
    %v519 = vsel %vm278, 1, 0
    %v520 = vsel %vm279, 1, 0
    %v521 = vsel %vm280, 1, 0
    %v522 = vsel %vm281, 1, 0
    %v523 = vsel %vm282, 1, 0
    %v524 = vsel %vm283, 1, 0
    %v525 = vsel %vm284, 1, 0
    %v526 = vsel %vm285, 1, 0
    %v527 = vsel %vm286, 1, 0
    %v528 = vsel %vm287, 1, 0
    %v529 = vsel %vm288, 1, 0
    %v530 = vsel %vm289, 1, 0
    %vm531 = vcmp.eq.s32.totalorder %v515, 1
    %vm532 = vcmp.eq.s32.totalorder %v516, 1
    %vm533 = vcmp.eq.s32.totalorder %v517, 1
    %vm534 = vcmp.eq.s32.totalorder %v518, 1
    %vm535 = vcmp.eq.s32.totalorder %v519, 1
    %vm536 = vcmp.eq.s32.totalorder %v520, 1
    %vm537 = vcmp.eq.s32.totalorder %v521, 1
    %vm538 = vcmp.eq.s32.totalorder %v522, 1
    %vm539 = vcmp.eq.s32.totalorder %v523, 1
    %vm540 = vcmp.eq.s32.totalorder %v524, 1
    %vm541 = vcmp.eq.s32.totalorder %v525, 1
    %vm542 = vcmp.eq.s32.totalorder %v526, 1
    %vm543 = vcmp.eq.s32.totalorder %v527, 1
    %vm544 = vcmp.eq.s32.totalorder %v528, 1
    %vm545 = vcmp.eq.s32.totalorder %v529, 1
    %vm546 = vcmp.eq.s32.totalorder %v530, 1
    %v547 = vsel %vm531, 0.0, %v451
    %v548 = vsel %vm532, 0.0, %v452
    %v549 = vsel %vm533, 0.0, %v453
    %v550 = vsel %vm534, 0.0, %v454
    %v551 = vsel %vm535, 0.0, %v455
    %v552 = vsel %vm536, 0.0, %v456
    %v553 = vsel %vm537, 0.0, %v457
    %v554 = vsel %vm538, 0.0, %v458
    %v555 = vsel %vm539, 0.0, %v459
    %v556 = vsel %vm540, 0.0, %v460
    %v557 = vsel %vm541, 0.0, %v461
    %v558 = vsel %vm542, 0.0, %v462
    %v559 = vsel %vm543, 0.0, %v463
    %v560 = vsel %vm544, 0.0, %v464
    %v561 = vsel %vm545, 0.0, %v465
    %v562 = vsel %vm546, 0.0, %v466
    %579 = vrot.lane.b32.xlu0 %v402, 3
    %v580 = vpop.permute.xlu0 %579
    %581 = vrot.lane.b32.xlu0 %v403, 3
    %v582 = vpop.permute.xlu0 %581
    %583 = vrot.lane.b32.xlu0 %v404, 3
    %v584 = vpop.permute.xlu0 %583
    %585 = vrot.lane.b32.xlu0 %v405, 3
    %v586 = vpop.permute.xlu0 %585
    %587 = vrot.lane.b32.xlu0 %v406, 3
    %v588 = vpop.permute.xlu0 %587
    %589 = vrot.lane.b32.xlu0 %v407, 3
    %v590 = vpop.permute.xlu0 %589
    %591 = vrot.lane.b32.xlu0 %v408, 3
    %v592 = vpop.permute.xlu0 %591
    %593 = vrot.lane.b32.xlu0 %v409, 3
    %v594 = vpop.permute.xlu0 %593
    %595 = vrot.lane.b32.xlu0 %v410, 3
    %v596 = vpop.permute.xlu0 %595
    %597 = vrot.lane.b32.xlu0 %v411, 3
    %v598 = vpop.permute.xlu0 %597
    %599 = vrot.lane.b32.xlu0 %v412, 3
    %v600 = vpop.permute.xlu0 %599
    %601 = vrot.lane.b32.xlu0 %v413, 3
    %v602 = vpop.permute.xlu0 %601
    %603 = vrot.lane.b32.xlu0 %v414, 3
    %v604 = vpop.permute.xlu0 %603
    %605 = vrot.lane.b32.xlu0 %v415, 3
    %v606 = vpop.permute.xlu0 %605
    %607 = vrot.lane.b32.xlu0 %v416, 3
    %v608 = vpop.permute.xlu0 %607
    %609 = vrot.lane.b32.xlu0 %v417, 3
    %v610 = vpop.permute.xlu0 %609
    %643 = vrot.lane.b32.xlu0 %v547, 6
    %v644 = vpop.permute.xlu0 %643
    %645 = vrot.lane.b32.xlu0 %v548, 6
    %v646 = vpop.permute.xlu0 %645
    %647 = vrot.lane.b32.xlu0 %v549, 6
    %v648 = vpop.permute.xlu0 %647
    %649 = vrot.lane.b32.xlu0 %v550, 6
    %v650 = vpop.permute.xlu0 %649
    %651 = vrot.lane.b32.xlu0 %v551, 6
    %v652 = vpop.permute.xlu0 %651
    %653 = vrot.lane.b32.xlu0 %v552, 6
    %v654 = vpop.permute.xlu0 %653
    %655 = vrot.lane.b32.xlu0 %v553, 6
    %v656 = vpop.permute.xlu0 %655
    %657 = vrot.lane.b32.xlu0 %v554, 6
    %v658 = vpop.permute.xlu0 %657
    %659 = vrot.lane.b32.xlu0 %v555, 6
    %v660 = vpop.permute.xlu0 %659
    %661 = vrot.lane.b32.xlu0 %v556, 6
    %v662 = vpop.permute.xlu0 %661
    %663 = vrot.lane.b32.xlu0 %v557, 6
    %v664 = vpop.permute.xlu0 %663
    %665 = vrot.lane.b32.xlu0 %v558, 6
    %v666 = vpop.permute.xlu0 %665
    %667 = vrot.lane.b32.xlu0 %v559, 6
    %v668 = vpop.permute.xlu0 %667
    %669 = vrot.lane.b32.xlu0 %v560, 6
    %v670 = vpop.permute.xlu0 %669
    %671 = vrot.lane.b32.xlu0 %v561, 6
    %v672 = vpop.permute.xlu0 %671
    %673 = vrot.lane.b32.xlu0 %v562, 6
    %v674 = vpop.permute.xlu0 %673
    %v691 = vsel %vm418, %v499, %v580
    %v692 = vsel %vm418, %v500, %v582
    %v693 = vsel %vm418, %v501, %v584
    %v694 = vsel %vm418, %v502, %v586
    %v695 = vsel %vm418, %v503, %v588
    %v696 = vsel %vm418, %v504, %v590
    %v697 = vsel %vm418, %v505, %v592
    %v698 = vsel %vm418, %v506, %v594
    %v699 = vsel %vm418, %v507, %v596
    %v700 = vsel %vm418, %v508, %v598
    %v701 = vsel %vm418, %v509, %v600
    %v702 = vsel %vm418, %v510, %v602
    %v703 = vsel %vm418, %v511, %v604
    %v704 = vsel %vm418, %v512, %v606
    %v705 = vsel %vm418, %v513, %v608
    %v706 = vsel %vm418, %v514, %v610
    %vm707 = vcmask 48128
    %v708 = vsel %vm707, %v691, %v644
    %v709 = vsel %vm707, %v692, %v646
    %v710 = vsel %vm707, %v693, %v648
    %v711 = vsel %vm707, %v694, %v650
    %v712 = vsel %vm707, %v695, %v652
    %v713 = vsel %vm707, %v696, %v654
    %v714 = vsel %vm707, %v697, %v656
    %v715 = vsel %vm707, %v698, %v658
    %v716 = vsel %vm707, %v699, %v660
    %v717 = vsel %vm707, %v700, %v662
    %v718 = vsel %vm707, %v701, %v664
    %v719 = vsel %vm707, %v702, %v666
    %v720 = vsel %vm707, %v703, %v668
    %v721 = vsel %vm707, %v704, %v670
    %v722 = vsel %vm707, %v705, %v672
    %v723 = vsel %vm707, %v706, %v674
    %v724 = vld [vmem:[%s1] sm:$0xff]
    %v725 = vld [vmem:[%s1 + $0x8] sm:$0x1]
    %v726 = vld [vmem:[%s2] sm:$0x1]
    %v728 = vperm.slane %v726, 0
    %vm730 = vcmask 72704
    %v732 = vsel %vm730, %v708, 0
    %v735 = vsel %vm730, %v709, 0
    %v738 = vsel %vm730, %v710, 0
    %v741 = vsel %vm730, %v711, 0
    %v744 = vsel %vm730, %v712, 0
    %v747 = vsel %vm730, %v713, 0
    %v750 = vsel %vm730, %v714, 0
    %v753 = vsel %vm730, %v715, 0
    %v756 = vsel %vm730, %v716, 0
    %v759 = vsel %vm730, %v717, 0
    %v762 = vsel %vm730, %v718, 0
    %v765 = vsel %vm730, %v719, 0
    %v768 = vsel %vm730, %v720, 0
    %v771 = vsel %vm730, %v721, 0
    %v774 = vsel %vm730, %v722, 0
    %v777 = vsel %vm730, %v723, 0
    %vm779 = vcmask 1040384
    %v781 = vsel %vm779, %v725, 0
    %783 = vmatpush.msra.mxu0 0.0
    %784 = vmatpush.msra.mxu0 0.0
    %785 = vmatpush.msra.mxu0 0.0
    %786 = vmatpush.msra.mxu0 0.0
    %787 = vmatpush.msra.mxu0 0.0
    %788 = vmatpush.msra.mxu0 0.0
    %789 = vmatpush.msra.mxu0 0.0
    %790 = vmatpush.msra.mxu0 0.0
    %791 = vmatpush.msra.mxu0 0.0
    %792 = vmatpush.msra.mxu0 0.0
    %793 = vmatpush.msra.mxu0 0.0
    %794 = vmatpush.msra.mxu0 0.0
    %795 = vmatpush.msra.mxu0 0.0
    %796 = vmatpush.msra.mxu0 0.0
    %797 = vmatpush.msra.mxu0 %v781
    %798 = vmatpush.msra.mxu0 %v724
    %799 = vmatmul.f32.gmra.mxu0 %v732
    %v800 = vpop.f32.mrf.mxu0
    %v801 = vadd.f32 %v728, %v800
    %802 = vmatmul.f32.gmra.mxu0 %v735
    %v803 = vpop.f32.mrf.mxu0
    %v804 = vadd.f32 %v728, %v803
    %805 = vmatmul.f32.gmra.mxu0 %v738
    %v806 = vpop.f32.mrf.mxu0
    %v807 = vadd.f32 %v728, %v806
    %808 = vmatmul.f32.gmra.mxu0 %v741
    %v809 = vpop.f32.mrf.mxu0
    %v810 = vadd.f32 %v728, %v809
    %811 = vmatmul.f32.gmra.mxu0 %v744
    %v812 = vpop.f32.mrf.mxu0
    %v813 = vadd.f32 %v728, %v812
    %814 = vmatmul.f32.gmra.mxu0 %v747
    %v815 = vpop.f32.mrf.mxu0
    %v816 = vadd.f32 %v728, %v815
    %817 = vmatmul.f32.gmra.mxu0 %v750
    %v818 = vpop.f32.mrf.mxu0
    %v819 = vadd.f32 %v728, %v818
    %820 = vmatmul.f32.gmra.mxu0 %v753
    %v821 = vpop.f32.mrf.mxu0
    %v822 = vadd.f32 %v728, %v821
    %823 = vmatmul.f32.gmra.mxu0 %v756
    %v824 = vpop.f32.mrf.mxu0
    %v825 = vadd.f32 %v728, %v824
    %826 = vmatmul.f32.gmra.mxu0 %v759
    %v827 = vpop.f32.mrf.mxu0
    %v828 = vadd.f32 %v728, %v827
    %829 = vmatmul.f32.gmra.mxu0 %v762
    %v830 = vpop.f32.mrf.mxu0
    %v831 = vadd.f32 %v728, %v830
    %832 = vmatmul.f32.gmra.mxu0 %v765
    %v833 = vpop.f32.mrf.mxu0
    %v834 = vadd.f32 %v728, %v833
    %835 = vmatmul.f32.gmra.mxu0 %v768
    %v836 = vpop.f32.mrf.mxu0
    %v837 = vadd.f32 %v728, %v836
    %838 = vmatmul.f32.gmra.mxu0 %v771
    %v839 = vpop.f32.mrf.mxu0
    %v840 = vadd.f32 %v728, %v839
    %841 = vmatmul.f32.gmra.mxu0 %v774
    %v842 = vpop.f32.mrf.mxu0
    %v843 = vadd.f32 %v728, %v842
    %844 = vmatmul.f32.gmra.mxu0 %v777
    %v845 = vpop.f32.mrf.mxu0
    %v846 = vadd.f32 %v728, %v845
    %847 = vdwg.mxu0
    %v848 = vmax.f32 %v801, 0.0
    %v849 = vmax.f32 %v804, 0.0
    %v850 = vmax.f32 %v807, 0.0
    %v851 = vmax.f32 %v810, 0.0
    %v852 = vmax.f32 %v813, 0.0
    %v853 = vmax.f32 %v816, 0.0
    %v854 = vmax.f32 %v819, 0.0
    %v855 = vmax.f32 %v822, 0.0
    %v856 = vmax.f32 %v825, 0.0
    %v857 = vmax.f32 %v828, 0.0
    %v858 = vmax.f32 %v831, 0.0
    %v859 = vmax.f32 %v834, 0.0
    %v860 = vmax.f32 %v837, 0.0
    %v861 = vmax.f32 %v840, 0.0
    %v862 = vmax.f32 %v843, 0.0
    %v863 = vmax.f32 %v846, 0.0
    %vm864 = vcmask 130048
    %865 = vst.msk [vmem:[#allocation3] sm:$0xff] %vm864, %v848
    %866 = vst.msk [vmem:[#allocation3 + $0x8] sm:$0xff] %vm864, %v849
    %867 = vst.msk [vmem:[#allocation3 + $0x10] sm:$0xff] %vm864, %v850
    %868 = vst.msk [vmem:[#allocation3 + $0x18] sm:$0xff] %vm864, %v851
    %869 = vst.msk [vmem:[#allocation3 + $0x20] sm:$0xff] %vm864, %v852
    %870 = vst.msk [vmem:[#allocation3 + $0x28] sm:$0xff] %vm864, %v853
    %871 = vst.msk [vmem:[#allocation3 + $0x30] sm:$0xff] %vm864, %v854
    %872 = vst.msk [vmem:[#allocation3 + $0x38] sm:$0xff] %vm864, %v855
    %873 = vst.msk [vmem:[#allocation3 + $0x40] sm:$0xff] %vm864, %v856
    %874 = vst.msk [vmem:[#allocation3 + $0x48] sm:$0xff] %vm864, %v857
    %875 = vst.msk [vmem:[#allocation3 + $0x50] sm:$0xff] %vm864, %v858
    %876 = vst.msk [vmem:[#allocation3 + $0x58] sm:$0xff] %vm864, %v859
    %877 = vst.msk [vmem:[#allocation3 + $0x60] sm:$0xff] %vm864, %v860
    %878 = vst.msk [vmem:[#allocation3 + $0x68] sm:$0xff] %vm864, %v861
    %879 = vst.msk [vmem:[#allocation3 + $0x70] sm:$0xff] %vm864, %v862
    %880 = vst.msk [vmem:[#allocation3 + $0x78] sm:$0xff] %vm864, %v863
    %v881 = vld [vmem:[#allocation3] ss:$2 sm:$0xff]
    %s882 = scalar_lea.vmem [#allocation3], 16
    %v883 = vld [vmem:[%s882] ss:$2 sm:$0xff]
    %s884 = scalar_lea.vmem [#allocation3], 32
    %v885 = vld [vmem:[%s884] ss:$2 sm:$0xff]
    %s886 = scalar_lea.vmem [#allocation3], 48
    %v887 = vld [vmem:[%s886] ss:$2 sm:$0xff]
    %s888 = scalar_lea.vmem [#allocation3], 64
    %v889 = vld [vmem:[%s888] ss:$2 sm:$0xff]
    %s890 = scalar_lea.vmem [#allocation3], 80
    %v891 = vld [vmem:[%s890] ss:$2 sm:$0xff]
    %s892 = scalar_lea.vmem [#allocation3], 96
    %v893 = vld [vmem:[%s892] ss:$2 sm:$0xff]
    %s894 = scalar_lea.vmem [#allocation3], 112
    %v895 = vld [vmem:[%s894] ss:$2 sm:$0xff]
    %s896 = scalar_lea.vmem [#allocation3], 1
    %v897 = vld [vmem:[%s896] ss:$2 sm:$0xff]
    %s898 = scalar_lea.vmem [#allocation3], 17
    %v899 = vld [vmem:[%s898] ss:$2 sm:$0xff]
    %s900 = scalar_lea.vmem [#allocation3], 33
    %v901 = vld [vmem:[%s900] ss:$2 sm:$0xff]
    %s902 = scalar_lea.vmem [#allocation3], 49
    %v903 = vld [vmem:[%s902] ss:$2 sm:$0xff]
    %s904 = scalar_lea.vmem [#allocation3], 65
    %v905 = vld [vmem:[%s904] ss:$2 sm:$0xff]
    %s906 = scalar_lea.vmem [#allocation3], 81
    %v907 = vld [vmem:[%s906] ss:$2 sm:$0xff]
    %s908 = scalar_lea.vmem [#allocation3], 97
    %v909 = vld [vmem:[%s908] ss:$2 sm:$0xff]
    %s910 = scalar_lea.vmem [#allocation3], 113
    %v911 = vld [vmem:[%s910] ss:$2 sm:$0xff]
    %v912 = vmax.f32 %v881, %v897
    %v913 = vmax.f32 %v883, %v899
    %v914 = vmax.f32 %v885, %v901
    %v915 = vmax.f32 %v887, %v903
    %v916 = vmax.f32 %v889, %v905
    %v917 = vmax.f32 %v891, %v907
    %v918 = vmax.f32 %v893, %v909
    %v919 = vmax.f32 %v895, %v911
    %920 = vst.msk [vmem:[#allocation4 + $0x8] sm:$0xff] %vm864, %v912
    %921 = vst.msk [vmem:[#allocation4 + $0x10] sm:$0xff] %vm864, %v913
    %922 = vst.msk [vmem:[#allocation4 + $0x18] sm:$0xff] %vm864, %v914
    %923 = vst.msk [vmem:[#allocation4 + $0x20] sm:$0xff] %vm864, %v915
    %924 = vst.msk [vmem:[#allocation4 + $0x28] sm:$0xff] %vm864, %v916
    %925 = vst.msk [vmem:[#allocation4 + $0x30] sm:$0xff] %vm864, %v917
    %926 = vst.msk [vmem:[#allocation4 + $0x38] sm:$0xff] %vm864, %v918
    %927 = vst.msk [vmem:[#allocation4 + $0x40] sm:$0xff] %vm864, %v919
    %v928 = vld [vmem:[#allocation4 + $0x7] sm:$0xff]
    %v929 = vld [vmem:[#allocation4 + $0xf] sm:$0xff]
    %v930 = vld [vmem:[#allocation4 + $0x17] sm:$0xff]
    %v931 = vld [vmem:[#allocation4 + $0x1f] sm:$0xff]
    %v932 = vld [vmem:[#allocation4 + $0x27] sm:$0xff]
    %v933 = vld [vmem:[#allocation4 + $0x2f] sm:$0xff]
    %v934 = vld [vmem:[#allocation4 + $0x37] sm:$0xff]
    %v935 = vld [vmem:[#allocation4 + $0x3f] sm:$0xff]
    %v936 = vld [vmem:[#allocation4 + $0x9] sm:$0xff]
    %v937 = vld [vmem:[#allocation4 + $0x11] sm:$0xff]
    %v938 = vld [vmem:[#allocation4 + $0x19] sm:$0xff]
    %v939 = vld [vmem:[#allocation4 + $0x21] sm:$0xff]
    %v940 = vld [vmem:[#allocation4 + $0x29] sm:$0xff]
    %v941 = vld [vmem:[#allocation4 + $0x31] sm:$0xff]
    %v942 = vld [vmem:[#allocation4 + $0x39] sm:$0xff]
    %v943 = vld [vmem:[#allocation4 + $0x41] sm:$0xff]
    %v944 = vsel %vm386, 1, 0
    %v945 = vsel %vm387, 1, 0
    %v946 = vsel %vm388, 1, 0
    %v947 = vsel %vm389, 1, 0
    %v948 = vsel %vm390, 1, 0
    %v949 = vsel %vm391, 1, 0
    %v950 = vsel %vm392, 1, 0
    %v951 = vsel %vm393, 1, 0
    %vm952 = vcmp.eq.s32.totalorder %v944, 1
    %vm953 = vcmp.eq.s32.totalorder %v945, 1
    %vm954 = vcmp.eq.s32.totalorder %v946, 1
    %vm955 = vcmp.eq.s32.totalorder %v947, 1
    %vm956 = vcmp.eq.s32.totalorder %v948, 1
    %vm957 = vcmp.eq.s32.totalorder %v949, 1
    %vm958 = vcmp.eq.s32.totalorder %v950, 1
    %vm959 = vcmp.eq.s32.totalorder %v951, 1
    %v960 = vsel %vm952, 0.0, %v928
    %v961 = vsel %vm953, 0.0, %v929
    %v962 = vsel %vm954, 0.0, %v930
    %v963 = vsel %vm955, 0.0, %v931
    %v964 = vsel %vm956, 0.0, %v932
    %v965 = vsel %vm957, 0.0, %v933
    %v966 = vsel %vm958, 0.0, %v934
    %v967 = vsel %vm959, 0.0, %v935
    %v968 = vsel %vm394, 1, 0
    %v969 = vsel %vm395, 1, 0
    %v970 = vsel %vm396, 1, 0
    %v971 = vsel %vm397, 1, 0
    %v972 = vsel %vm398, 1, 0
    %v973 = vsel %vm399, 1, 0
    %v974 = vsel %vm400, 1, 0
    %v975 = vsel %vm401, 1, 0
    %vm976 = vcmp.eq.s32.totalorder %v968, 1
    %vm977 = vcmp.eq.s32.totalorder %v969, 1
    %vm978 = vcmp.eq.s32.totalorder %v970, 1
    %vm979 = vcmp.eq.s32.totalorder %v971, 1
    %vm980 = vcmp.eq.s32.totalorder %v972, 1
    %vm981 = vcmp.eq.s32.totalorder %v973, 1
    %vm982 = vcmp.eq.s32.totalorder %v974, 1
    %vm983 = vcmp.eq.s32.totalorder %v975, 1
    %v984 = vsel %vm976, 0.0, %v936
    %v985 = vsel %vm977, 0.0, %v937
    %v986 = vsel %vm978, 0.0, %v938
    %v987 = vsel %vm979, 0.0, %v939
    %v988 = vsel %vm980, 0.0, %v940
    %v989 = vsel %vm981, 0.0, %v941
    %v990 = vsel %vm982, 0.0, %v942
    %v991 = vsel %vm983, 0.0, %v943
    %1000 = vrot.lane.b32.xlu0 %v912, 16
    %v1001 = vpop.permute.xlu0 %1000
    %1002 = vrot.lane.b32.xlu0 %v913, 16
    %v1003 = vpop.permute.xlu0 %1002
    %1004 = vrot.lane.b32.xlu0 %v914, 16
    %v1005 = vpop.permute.xlu0 %1004
    %1006 = vrot.lane.b32.xlu0 %v915, 16
    %v1007 = vpop.permute.xlu0 %1006
    %1008 = vrot.lane.b32.xlu0 %v916, 16
    %v1009 = vpop.permute.xlu0 %1008
    %1010 = vrot.lane.b32.xlu0 %v917, 16
    %v1011 = vpop.permute.xlu0 %1010
    %1012 = vrot.lane.b32.xlu0 %v918, 16
    %v1013 = vpop.permute.xlu0 %1012
    %1014 = vrot.lane.b32.xlu0 %v919, 16
    %v1015 = vpop.permute.xlu0 %1014
    %1032 = vrot.lane.b32.xlu0 %v984, 32
    %v1033 = vpop.permute.xlu0 %1032
    %1034 = vrot.lane.b32.xlu0 %v985, 32
    %v1035 = vpop.permute.xlu0 %1034
    %1036 = vrot.lane.b32.xlu0 %v986, 32
    %v1037 = vpop.permute.xlu0 %1036
    %1038 = vrot.lane.b32.xlu0 %v987, 32
    %v1039 = vpop.permute.xlu0 %1038
    %1040 = vrot.lane.b32.xlu0 %v988, 32
    %v1041 = vpop.permute.xlu0 %1040
    %1042 = vrot.lane.b32.xlu0 %v989, 32
    %v1043 = vpop.permute.xlu0 %1042
    %1044 = vrot.lane.b32.xlu0 %v990, 32
    %v1045 = vpop.permute.xlu0 %1044
    %1046 = vrot.lane.b32.xlu0 %v991, 32
    %v1047 = vpop.permute.xlu0 %1046
    %v1056 = vsel %vm864, %v960, %v1001
    %v1057 = vsel %vm864, %v961, %v1003
    %v1058 = vsel %vm864, %v962, %v1005
    %v1059 = vsel %vm864, %v963, %v1007
    %v1060 = vsel %vm864, %v964, %v1009
    %v1061 = vsel %vm864, %v965, %v1011
    %v1062 = vsel %vm864, %v966, %v1013
    %v1063 = vsel %vm864, %v967, %v1015
    %vm1064 = vcmask 261120
    %v1065 = vsel %vm1064, %v1056, %v1033
    %v1066 = vsel %vm1064, %v1057, %v1035
    %v1067 = vsel %vm1064, %v1058, %v1037
    %v1068 = vsel %vm1064, %v1059, %v1039
    %v1069 = vsel %vm1064, %v1060, %v1041
    %v1070 = vsel %vm1064, %v1061, %v1043
    %v1071 = vsel %vm1064, %v1062, %v1045
    %v1072 = vsel %vm1064, %v1063, %v1047
    %v1073 = vld [vmem:[%s3] sm:$0xff]
    %v1074 = vld [vmem:[%s3 + $0x8] sm:$0xff]
    %v1075 = vld [vmem:[%s3 + $0x10] sm:$0xff]
    %v1076 = vld [vmem:[%s3 + $0x18] sm:$0xff]
    %v1077 = vld [vmem:[%s3 + $0x20] sm:$0xff]
    %v1078 = vld [vmem:[%s3 + $0x28] sm:$0xff]
    %v1079 = vld [vmem:[%s4] sm:$0x1]
    %v1081 = vperm.slane %v1079, 0
    %vm1083 = vcmask 392192
    %v1085 = vsel %vm1083, %v1065, 0
    %v1088 = vsel %vm1083, %v1066, 0
    %v1091 = vsel %vm1083, %v1067, 0
    %v1094 = vsel %vm1083, %v1068, 0
    %v1097 = vsel %vm1083, %v1069, 0
    %v1100 = vsel %vm1083, %v1070, 0
    %v1103 = vsel %vm1083, %v1071, 0
    %v1106 = vsel %vm1083, %v1072, 0
    %1108 = vmatpush.msra.mxu0 0.0
    %1109 = vmatpush.msra.mxu0 0.0
    %1110 = vmatpush.msra.mxu0 0.0
    %1111 = vmatpush.msra.mxu0 0.0
    %1112 = vmatpush.msra.mxu0 0.0
    %1113 = vmatpush.msra.mxu0 0.0
    %1114 = vmatpush.msra.mxu0 0.0
    %1115 = vmatpush.msra.mxu0 0.0
    %1116 = vmatpush.msra.mxu0 0.0
    %1117 = vmatpush.msra.mxu0 0.0
    %1118 = vmatpush.msra.mxu0 %v1078
    %1119 = vmatpush.msra.mxu0 %v1077
    %1120 = vmatpush.msra.mxu0 %v1076
    %1121 = vmatpush.msra.mxu0 %v1075
    %1122 = vmatpush.msra.mxu0 %v1074
    %1123 = vmatpush.msra.mxu0 %v1073
    %1124 = vmatmul.f32.gmra.mxu0 %v1085
    %v1125 = vpop.f32.mrf.mxu0
    %v1126 = vadd.f32 %v1081, %v1125
    %1127 = vmatmul.f32.gmra.mxu0 %v1088
    %v1128 = vpop.f32.mrf.mxu0
    %v1129 = vadd.f32 %v1081, %v1128
    %1130 = vmatmul.f32.gmra.mxu0 %v1091
    %v1131 = vpop.f32.mrf.mxu0
    %v1132 = vadd.f32 %v1081, %v1131
    %1133 = vmatmul.f32.gmra.mxu0 %v1094
    %v1134 = vpop.f32.mrf.mxu0
    %v1135 = vadd.f32 %v1081, %v1134
    %1136 = vmatmul.f32.gmra.mxu0 %v1097
    %v1137 = vpop.f32.mrf.mxu0
    %v1138 = vadd.f32 %v1081, %v1137
    %1139 = vmatmul.f32.gmra.mxu0 %v1100
    %v1140 = vpop.f32.mrf.mxu0
    %v1141 = vadd.f32 %v1081, %v1140
    %1142 = vmatmul.f32.gmra.mxu0 %v1103
    %v1143 = vpop.f32.mrf.mxu0
    %v1144 = vadd.f32 %v1081, %v1143
    %1145 = vmatmul.f32.gmra.mxu0 %v1106
    %v1146 = vpop.f32.mrf.mxu0
    %v1147 = vadd.f32 %v1081, %v1146
    %1148 = vdwg.mxu0
    %v1149 = vmax.f32 %v1126, 0.0
    %v1150 = vmax.f32 %v1129, 0.0
    %v1151 = vmax.f32 %v1132, 0.0
    %v1152 = vmax.f32 %v1135, 0.0
    %v1153 = vmax.f32 %v1138, 0.0
    %v1154 = vmax.f32 %v1141, 0.0
    %v1155 = vmax.f32 %v1144, 0.0
    %v1156 = vmax.f32 %v1147, 0.0
    %1157 = vst.msk [vmem:[#allocation5] sm:$0xff] %vm1064, %v1149
    %1158 = vst.msk [vmem:[#allocation5 + $0x8] sm:$0xff] %vm1064, %v1150
    %1159 = vst.msk [vmem:[#allocation5 + $0x10] sm:$0xff] %vm1064, %v1151
    %1160 = vst.msk [vmem:[#allocation5 + $0x18] sm:$0xff] %vm1064, %v1152
    %1161 = vst.msk [vmem:[#allocation5 + $0x20] sm:$0xff] %vm1064, %v1153
    %1162 = vst.msk [vmem:[#allocation5 + $0x28] sm:$0xff] %vm1064, %v1154
    %1163 = vst.msk [vmem:[#allocation5 + $0x30] sm:$0xff] %vm1064, %v1155
    %1164 = vst.msk [vmem:[#allocation5 + $0x38] sm:$0xff] %vm1064, %v1156
    %v1165 = vld [vmem:[#allocation5] ss:$8 sm:$0xf]
    %v1166 = vld [vmem:[#allocation5] ss:$8 sm:$0xf0]
    %v1167 = vor.u32 %v1165, %v1166
    %s1168 = scalar_lea.vmem [#allocation5], 1
    %v1169 = vld [vmem:[%s1168] ss:$8 sm:$0xf]
    %v1170 = vld [vmem:[%s1168] ss:$8 sm:$0xf0]
    %v1171 = vor.u32 %v1169, %v1170
    %v1172 = vmax.f32 %v1167, %v1171
    %s1173 = scalar_lea.vmem [#allocation5], 2
    %v1174 = vld [vmem:[%s1173] ss:$8 sm:$0xf]
    %v1175 = vld [vmem:[%s1173] ss:$8 sm:$0xf0]
    %v1176 = vor.u32 %v1174, %v1175
    %s1177 = scalar_lea.vmem [#allocation5], 3
    %v1178 = vld [vmem:[%s1177] ss:$8 sm:$0xf]
    %v1179 = vld [vmem:[%s1177] ss:$8 sm:$0xf0]
    %v1180 = vor.u32 %v1178, %v1179
    %v1181 = vmax.f32 %v1176, %v1180
    %s1182 = scalar_lea.vmem [#allocation5], 4
    %v1183 = vld [vmem:[%s1182] ss:$8 sm:$0xf]
    %v1184 = vld [vmem:[%s1182] ss:$8 sm:$0xf0]
    %v1185 = vor.u32 %v1183, %v1184
    %s1186 = scalar_lea.vmem [#allocation5], 5
    %v1187 = vld [vmem:[%s1186] ss:$8 sm:$0xf]
    %v1188 = vld [vmem:[%s1186] ss:$8 sm:$0xf0]
    %v1189 = vor.u32 %v1187, %v1188
    %v1190 = vmax.f32 %v1185, %v1189
    %s1191 = scalar_lea.vmem [#allocation5], 6
    %v1192 = vld [vmem:[%s1191] ss:$8 sm:$0xf]
    %v1193 = vld [vmem:[%s1191] ss:$8 sm:$0xf0]
    %v1194 = vor.u32 %v1192, %v1193
    %s1195 = scalar_lea.vmem [#allocation5], 7
    %v1196 = vld [vmem:[%s1195] ss:$8 sm:$0xf]
    %v1197 = vld [vmem:[%s1195] ss:$8 sm:$0xf0]
    %v1198 = vor.u32 %v1196, %v1197
    %v1199 = vmax.f32 %v1194, %v1198
    %1201 = vrot.lane.b32.xlu0 %v1181, 32
    %v1202 = vpop.permute.xlu0 %1201
    %1205 = vrot.lane.b32.xlu0 %v1190, 64
    %v1206 = vpop.permute.xlu0 %1205
    %1209 = vrot.lane.b32.xlu0 %v1199, 96
    %v1210 = vpop.permute.xlu0 %1209
    %v1212 = vsel %vm1064, %v1172, %v1202
    %vm1213 = vcmask 523264
    %v1214 = vsel %vm1213, %v1212, %v1206
    %vm1215 = vcmask 785408
    %v1216 = vsel %vm1215, %v1214, %v1210
    %v1217 = vld [vmem:[%s5] sm:$0xff]
    %v1218 = vld [vmem:[%s5 + $0x8] sm:$0xff]
    %v1219 = vld [vmem:[%s5 + $0x10] sm:$0xff]
    %v1220 = vld [vmem:[%s5 + $0x18] sm:$0xff]
    %v1221 = vld [vmem:[%s5 + $0x20] sm:$0xff]
    %v1222 = vld [vmem:[%s5 + $0x28] sm:$0xff]
    %v1223 = vld [vmem:[%s5 + $0x30] sm:$0xff]
    %v1224 = vld [vmem:[%s5 + $0x38] sm:$0xff]
    %v1225 = vld [vmem:[%s5 + $0x40] sm:$0xff]
    %v1226 = vld [vmem:[%s5 + $0x48] sm:$0xff]
    %v1227 = vld [vmem:[%s5 + $0x50] sm:$0xff]
    %v1228 = vld [vmem:[%s5 + $0x58] sm:$0xff]
    %v1229 = vld [vmem:[%s5 + $0x60] sm:$0xff]
    %v1230 = vld [vmem:[%s5 + $0x68] sm:$0xff]
    %v1231 = vld [vmem:[%s5 + $0x70] sm:$0xff]
    %v1232 = vld [vmem:[%s5 + $0x78] sm:$0xff]
    %v1233 = vld [vmem:[%s6] sm:$0x1]
    %v1235 = vperm.slane %v1233, 0
    %1237 = vmatpush.msra.mxu0 %v1232
    %1238 = vmatpush.msra.mxu0 %v1231
    %1239 = vmatpush.msra.mxu0 %v1230
    %1240 = vmatpush.msra.mxu0 %v1229
    %1241 = vmatpush.msra.mxu0 %v1228
    %1242 = vmatpush.msra.mxu0 %v1227
    %1243 = vmatpush.msra.mxu0 %v1226
    %1244 = vmatpush.msra.mxu0 %v1225
    %1245 = vmatpush.msra.mxu0 %v1224
    %1246 = vmatpush.msra.mxu0 %v1223
    %1247 = vmatpush.msra.mxu0 %v1222
    %1248 = vmatpush.msra.mxu0 %v1221
    %1249 = vmatpush.msra.mxu0 %v1220
    %1250 = vmatpush.msra.mxu0 %v1219
    %1251 = vmatpush.msra.mxu0 %v1218
    %1252 = vmatpush.msra.mxu0 %v1217
    %1253 = vmatmul.f32.gmra.mxu0 %v1216
    %v1254 = vpop.f32.mrf.mxu0
    %v1255 = vadd.f32 %v1235, %v1254
    %1256 = vdwg.mxu0
    %v1257 = vmax.f32 %v1255, 0.0
    %v1258 = vld [vmem:[#allocation6] sm:$0xff]
    %v1259 = vld [vmem:[#allocation6 + $0x8] sm:$0xff]
    %v1260 = vld [vmem:[#allocation6 + $0x10] sm:$0xff]
    %v1261 = vld [vmem:[#allocation6 + $0x18] sm:$0xff]
    %v1262 = vld [vmem:[#allocation6 + $0x20] sm:$0xff]
    %v1263 = vld [vmem:[#allocation6 + $0x28] sm:$0xff]
    %v1264 = vld [vmem:[#allocation6 + $0x30] sm:$0xff]
    %v1265 = vld [vmem:[#allocation6 + $0x38] sm:$0xff]
    %v1266 = vld [vmem:[#allocation6 + $0x40] sm:$0xff]
    %v1267 = vld [vmem:[#allocation6 + $0x48] sm:$0xff]
    %v1268 = vld [vmem:[#allocation6 + $0x50] sm:$0xff]
    %v1269 = vld [vmem:[#allocation6 + $0x58] sm:$0xff]
    %v1270 = vld [vmem:[#allocation6 + $0x60] sm:$0xff]
    %v1271 = vld [vmem:[#allocation6 + $0x68] sm:$0xff]
    %v1272 = vld [vmem:[#allocation6 + $0x70] sm:$0xff]
    %v1273 = vld [vmem:[#allocation6 + $0x78] sm:$0xff]
    %v1274 = vld [vmem:[%s8] sm:$0x1]
    %v1276 = vperm.slane %v1274, 0
    %1278 = vmatpush.msra.mxu0 %v1273
    %1279 = vmatpush.msra.mxu0 %v1272
    %1280 = vmatpush.msra.mxu0 %v1271
    %1281 = vmatpush.msra.mxu0 %v1270
    %1282 = vmatpush.msra.mxu0 %v1269
    %1283 = vmatpush.msra.mxu0 %v1268
    %1284 = vmatpush.msra.mxu0 %v1267
    %1285 = vmatpush.msra.mxu0 %v1266
    %1286 = vmatpush.msra.mxu0 %v1265
    %1287 = vmatpush.msra.mxu0 %v1264
    %1288 = vmatpush.msra.mxu0 %v1263
    %1289 = vmatpush.msra.mxu0 %v1262
    %1290 = vmatpush.msra.mxu0 %v1261
    %1291 = vmatpush.msra.mxu0 %v1260
    %1292 = vmatpush.msra.mxu0 %v1259
    %1293 = vmatpush.msra.mxu0 %v1258
    %1294 = vmatmul.f32.gmra.mxu0 %v1257
    %v1295 = vpop.f32.mrf.mxu0
    %v1296 = vadd.f32 %v1276, %v1295
    %1297 = vdwg.mxu0
    %1298 = vst [vmem:[#allocation9] sm:$0xff] %v1296
    // Predicated region
    $region42: #{tpu_custom_call.1} parent=1 // pred_check
      _
    $region43: #{tpu_custom_call.1} parent=1 // pred_check_branch
      %1300 = sbr.rel (0) target = $region45
    $region44: #{tpu_custom_call.1} parent=1 // pred_region
      %1302 = vsyncadd [#allocation8], 0
      %s1304 = sshll.u32 [#allocation9], 4
      %s1305 = int_to_ptr.vmem [resolvable:$true] %s1304
      %s1306 = sshll.u32 %s9, 4
      %s1307 = int_to_ptr.hbm [resolvable:$true] %s1306
      %1309 = dma.vmem_to_hbm [thread:$0]  %s1305, 128, %s1307, [#allocation8]
    $region45: #{tpu_custom_call.1} parent=1 // pred_fallthru
      _
    // Predicated region
    $region46: #{tpu_custom_call.1} parent=1 // pred_check
      _
    $region47: #{tpu_custom_call.1} parent=1 // pred_check_branch
      %1311 = sbr.rel (0) target = $region49
    $region48: #{tpu_custom_call.1} parent=1 // pred_region
      %1313 = dma.done [#allocation8], 128
    $region49: #{tpu_custom_call.1} parent=1 // pred_fallthru
      _
    %1314 = vsyncpa [#allocation7], 1
    %1315 = vsyncpa [#allocation8], 1

</llo_original>
